<compile_context>
chip_gen: v5e
topology: v5e:2x2
jax: 0.10.0
libtpu: 0.0.40
codegen_flags: <defaults>
</compile_context>

<pallas_src>
import numpy as np
import jax
import jax.numpy as jnp
from jax.experimental import pallas as pl
from jax.experimental.pallas import tpu as pltpu

L0 = 36        # sequence length after PyTorch's input.reshape(-1, 1, 36)
TB_MAX = 512   # max batch tile (on lanes); multiple of 128


def _make_input_position_order():
    """Permutation of the 36 input positions so every MaxPool1d(2) becomes a single
    max of two contiguous lane-block halves, and the final two positions come out in
    natural order (matching PyTorch's Flatten feature index c*2 + l)."""
    order = [0, 1]                       # arrangement of the final (post layer-4) positions
    for P in (4, 9, 18, 36):             # walk backwards through layer input lengths
        order = ([2 * o for o in order] + [2 * o + 1 for o in order]
                 + list(range(2 * len(order), P)))   # leftovers (floor pooling) at the end
    return order


_POS_ORDER = np.array(_make_input_position_order(), dtype=np.int32)


def _build_kernel(TB):
    def kernel(x_ref, w1_ref, b1_ref, w2_ref, b2_ref, w3_ref, b3_ref,
               w4_ref, b4_ref, w5a_ref, w5b_ref, b5_ref, o_ref):
        # x_ref: (1, 36*TB) f32 -- positions (pool-friendly order) x batch, all on lanes.
        x = x_ref[...]

        # Layer 1: Conv1d(1, 16, 1) == per-channel scale + bias.  One broadcast FMA + ReLU.
        h = jnp.maximum(w1_ref[...] * x + b1_ref[...], 0.0)          # (16, 36*TB)
        # MaxPool1d(2): one max of two contiguous 128-aligned lane halves.
        h = jnp.maximum(h[:, :18 * TB], h[:, 18 * TB:36 * TB])       # (16, 18*TB)

        def conv_relu(w_ref, b_ref, h):
            # (Co, Ci) bf16 @ (Ci, P*TB) bf16 -> f32, + bias, ReLU: one wide op each.
            return jnp.maximum(
                jnp.dot(w_ref[...], h.astype(jnp.bfloat16),
                        preferred_element_type=jnp.float32) + b_ref[...], 0.0)

        h = conv_relu(w2_ref, b2_ref, h)                              # (32, 18*TB)
        h = jnp.maximum(h[:, :9 * TB], h[:, 9 * TB:18 * TB])          # (32, 9*TB)

        h = conv_relu(w3_ref, b3_ref, h)                              # (64, 9*TB)
        # Floor-mode pooling: 9 -> 4, the odd trailing position (last lane block) drops.
        h = jnp.maximum(h[:, :4 * TB], h[:, 4 * TB:8 * TB])           # (64, 4*TB)

        h = conv_relu(w4_ref, b4_ref, h)                              # (128, 4*TB)
        h = jnp.maximum(h[:, :2 * TB], h[:, 2 * TB:4 * TB])           # (128, 2*TB)

        # Flatten (feature = c*2 + l) + Linear(256, 2) + Sigmoid:
        # two f32 (2,128)@(128,TB) matmuls (l=0 and l=1 weight slices) + bias.
        logits = (jnp.dot(w5a_ref[...], h[:, :TB],
                          preferred_element_type=jnp.float32)
                  + jnp.dot(w5b_ref[...], h[:, TB:2 * TB],
                            preferred_element_type=jnp.float32)
                  + b5_ref[...])                                       # (2, TB)
        o_ref[...] = jax.nn.sigmoid(logits)

    return kernel


def _choose_tile(B):
    """Pick (TB, nb): TB a multiple of 128, nb grid steps, minimal padding, TB <= TB_MAX."""
    n128 = -(-B // 128)                    # 128-lane groups needed
    nb = -(-n128 // (TB_MAX // 128))       # number of grid steps
    TB = -(-n128 // nb) * 128
    return TB, nb


def cnn_forward(x, params):
    """x: any shape whose total element count is a multiple of 36 (reshape(-1, 1, 36))."""
    w1, b1, w2, b2, w3, b3, w4, b4, w5, b5 = params
    x = x.reshape(-1, L0).astype(jnp.float32)
    B = x.shape[0]

    TB, nb = _choose_tile(B)
    Bp = nb * TB
    if Bp != B:
        x = jnp.pad(x, ((0, Bp - B), (0, 0)))

    # Permute positions to the pool-friendly lane order, put batch on lanes
    # (position-major), and flatten to one lane-dense (1, 36*TB) slab per grid step.
    x = x[:, _POS_ORDER]
    xk = x.reshape(nb, TB, L0).transpose(0, 2, 1).reshape(nb, 1, L0 * TB)

    # Kernel-side parameters: conv weights as (Co, Ci) MXU operands (bf16 for layers 2-4),
    # biases as f32 (C, 1) columns, final Linear split into its l=0 / l=1 slices (f32).
    kparams = (
        w1.T.astype(jnp.float32), b1.reshape(-1, 1).astype(jnp.float32),
        w2.T.astype(jnp.bfloat16), b2.reshape(-1, 1).astype(jnp.float32),
        w3.T.astype(jnp.bfloat16), b3.reshape(-1, 1).astype(jnp.float32),
        w4.T.astype(jnp.bfloat16), b4.reshape(-1, 1).astype(jnp.float32),
        w5[0::2, :].T.astype(jnp.float32),        # (2, 128): features c*2 + 0
        w5[1::2, :].T.astype(jnp.float32),        # (2, 128): features c*2 + 1
        b5.reshape(-1, 1).astype(jnp.float32),
    )

    in_specs = [pl.BlockSpec((None, 1, L0 * TB), lambda i: (i, 0, 0))]
    for p in kparams:
        in_specs.append(pl.BlockSpec(p.shape, lambda i, n=p.ndim: (0,) * n))

    out = pl.pallas_call(
        _build_kernel(TB),
        out_shape=jax.ShapeDtypeStruct((nb, 2, TB), jnp.float32),
        grid=(nb,),
        in_specs=in_specs,
        out_specs=pl.BlockSpec((None, 2, TB), lambda i: (i, 0, 0)),
        compiler_params=pltpu.CompilerParams(
            dimension_semantics=("parallel",),
            vmem_limit_bytes=32 * 1024 * 1024),
    )(xk, *kparams)

    # (nb, 2, TB) -> (Bp, 2), drop batch padding rows.
    return out.transpose(0, 2, 1).reshape(Bp, 2)[:B]


def cnn_ref(x, params):
    """Pure-JAX f32 reference mirroring the PyTorch module exactly."""
    w1, b1, w2, b2, w3, b3, w4, b4, w5, b5 = params
    x = x.reshape(-1, L0).astype(jnp.float32)
    h = x[:, :, None]                                    # (B, L, 1)
    for w, b in ((w1, b1), (w2, b2), (w3, b3), (w4, b4)):
        h = jnp.maximum(h @ w + b, 0.0)                  # 1x1 conv + ReLU
        Lo = h.shape[1] // 2
        h = jnp.maximum(h[:, 0:2 * Lo:2, :], h[:, 1:2 * Lo:2, :])   # MaxPool1d(2), floor
    # PyTorch Flatten of (B, C, L): feature index = c * L + l
    flat = jnp.transpose(h, (0, 2, 1)).reshape(h.shape[0], -1)      # (B, 256)
    return jax.nn.sigmoid(flat @ w5 + b5)


def make_params(key):
    ks = jax.random.split(key, 10)

    def w(k, shape, scale):
        return jax.random.normal(k, shape, jnp.float32) * scale

    w1 = w(ks[0], (1, 16), 0.5);    b1 = w(ks[1], (16,), 0.1)
    w2 = w(ks[2], (16, 32), 0.25);  b2 = w(ks[3], (32,), 0.1)
    w3 = w(ks[4], (32, 64), 0.18);  b3 = w(ks[5], (64,), 0.1)
    w4 = w(ks[6], (64, 128), 0.12); b4 = w(ks[7], (128,), 0.1)
    w5 = w(ks[8], (256, 2), 0.06);  b5 = w(ks[9], (2,), 0.1)
    return (w1, b1, w2, b2, w3, b3, w4, b4, w5, b5)


if __name__ == "__main__":
    root = jax.random.PRNGKey(0)
    kx, kp = jax.random.split(root)
    params = make_params(kp)

    # Small shape consistent with the module's reshape(-1, 1, 36): batch=16.
    x = jax.random.normal(kx, (16, 36), jnp.float32)
    out = jax.block_until_ready(cnn_forward(x, params))
    ref = cnn_ref(x, params)
    assert out.shape == (16, 2)
    # bf16 MXU operands in the conv stack -> slightly relaxed tolerance vs f32 reference.
    np.testing.assert_allclose(np.asarray(out), np.asarray(ref), rtol=1e-2, atol=1e-2)

    # Larger ragged batch: exercises TB=384, nb=2 parallel grid steps and batch padding.
    x2 = jax.random.normal(jax.random.PRNGKey(1), (520, 36), jnp.float32)
    out2 = jax.block_until_ready(cnn_forward(x2, params))
    ref2 = cnn_ref(x2, params)
    assert out2.shape == (520, 2)
    np.testing.assert_allclose(np.asarray(out2), np.asarray(ref2), rtol=1e-2, atol=1e-2)

    print("KERNEL_OK")
</pallas_src>

<mosaic_0001>
module attributes {stable_mosaic.version = 11 : i64} {
  func.func @kernel(%arg0: i32, %arg1: memref<1x1x4608xf32, #tpu.memory_space<vmem>>, %arg2: memref<16x1xf32, #tpu.memory_space<vmem>>, %arg3: memref<16x1xf32, #tpu.memory_space<vmem>>, %arg4: memref<32x16xbf16, #tpu.memory_space<vmem>>, %arg5: memref<32x1xf32, #tpu.memory_space<vmem>>, %arg6: memref<64x32xbf16, #tpu.memory_space<vmem>>, %arg7: memref<64x1xf32, #tpu.memory_space<vmem>>, %arg8: memref<128x64xbf16, #tpu.memory_space<vmem>>, %arg9: memref<128x1xf32, #tpu.memory_space<vmem>>, %arg10: memref<2x128xf32, #tpu.memory_space<vmem>>, %arg11: memref<2x128xf32, #tpu.memory_space<vmem>>, %arg12: memref<2x1xf32, #tpu.memory_space<vmem>>, %arg13: memref<1x2x128xf32, #tpu.memory_space<vmem>>) attributes {dimension_semantics = [#tpu.dimension_semantics<parallel>], iteration_bounds = array<i64: 1>, scalar_prefetch = 0 : i64, scratch_operands = 0 : i64, tpu.core_type = #tpu.core_type<tc>, window_params = [{transform_indices = @transform_0, window_bounds = array<i64: 1, 1, 4608>}, {pipeline_mode = #tpu.pipeline_mode<synchronous>, transform_indices = @transform_1, window_bounds = array<i64: 16, 1>}, {pipeline_mode = #tpu.pipeline_mode<synchronous>, transform_indices = @transform_2, window_bounds = array<i64: 16, 1>}, {pipeline_mode = #tpu.pipeline_mode<synchronous>, transform_indices = @transform_3, window_bounds = array<i64: 32, 16>}, {pipeline_mode = #tpu.pipeline_mode<synchronous>, transform_indices = @transform_4, window_bounds = array<i64: 32, 1>}, {pipeline_mode = #tpu.pipeline_mode<synchronous>, transform_indices = @transform_5, window_bounds = array<i64: 64, 32>}, {pipeline_mode = #tpu.pipeline_mode<synchronous>, transform_indices = @transform_6, window_bounds = array<i64: 64, 1>}, {pipeline_mode = #tpu.pipeline_mode<synchronous>, transform_indices = @transform_7, window_bounds = array<i64: 128, 64>}, {pipeline_mode = #tpu.pipeline_mode<synchronous>, transform_indices = @transform_8, window_bounds = array<i64: 128, 1>}, {pipeline_mode = #tpu.pipeline_mode<synchronous>, transform_indices = @transform_9, window_bounds = array<i64: 2, 128>}, {pipeline_mode = #tpu.pipeline_mode<synchronous>, transform_indices = @transform_10, window_bounds = array<i64: 2, 128>}, {pipeline_mode = #tpu.pipeline_mode<synchronous>, transform_indices = @transform_11, window_bounds = array<i64: 2, 1>}, {transform_indices = @transform_12, window_bounds = array<i64: 1, 2, 128>}]} {
    %c0 = arith.constant 0 : index
    %c0_0 = arith.constant 0 : index
    %c0_1 = arith.constant 0 : index
    %0 = vector.load %arg1[%c0, %c0_0, %c0_1] : memref<1x1x4608xf32, #tpu.memory_space<vmem>>, vector<1x1x4608xf32>
    %1 = vector.shape_cast %0 : vector<1x1x4608xf32> to vector<1x4608xf32>
    %c0_2 = arith.constant 0 : index
    %c0_3 = arith.constant 0 : index
    %2 = vector.load %arg2[%c0_2, %c0_3] : memref<16x1xf32, #tpu.memory_space<vmem>>, vector<16x1xf32>
    %3 = vector.broadcast %2 : vector<16x1xf32> to vector<16x4608xf32>
    %4 = vector.broadcast %1 : vector<1x4608xf32> to vector<16x4608xf32>
    %5 = arith.mulf %3, %4 : vector<16x4608xf32>
    %c0_4 = arith.constant 0 : index
    %c0_5 = arith.constant 0 : index
    %6 = vector.load %arg3[%c0_4, %c0_5] : memref<16x1xf32, #tpu.memory_space<vmem>>, vector<16x1xf32>
    %7 = vector.broadcast %6 : vector<16x1xf32> to vector<16x4608xf32>
    %8 = arith.addf %5, %7 : vector<16x4608xf32>
    %cst = arith.constant 0.000000e+00 : f32
    %9 = vector.broadcast %cst : f32 to vector<16x4608xf32>
    %10 = arith.maximumf %8, %9 : vector<16x4608xf32>
    %11 = vector.extract_strided_slice %10 {offsets = [0, 0], sizes = [16, 2304], strides = [1, 1]} : vector<16x4608xf32> to vector<16x2304xf32>
    %12 = vector.extract_strided_slice %10 {offsets = [0, 2304], sizes = [16, 2304], strides = [1, 1]} : vector<16x4608xf32> to vector<16x2304xf32>
    %13 = arith.maximumf %11, %12 : vector<16x2304xf32>
    %c0_6 = arith.constant 0 : index
    %c0_7 = arith.constant 0 : index
    %14 = vector.load %arg4[%c0_6, %c0_7] : memref<32x16xbf16, #tpu.memory_space<vmem>>, vector<32x16xbf16>
    %15 = arith.truncf %13 : vector<16x2304xf32> to vector<16x2304xbf16>
    %cst_8 = arith.constant dense<0.000000e+00> : vector<32x2304xf32>
    %16 = tpu.matmul %14, %15, %cst_8 {dimension_numbers = #tpu.dot_dimension_numbers<[1], [0], [0], [1], [0, 0, 1, 1], [], []>} : vector<32x16xbf16>, vector<16x2304xbf16>, vector<32x2304xf32> -> vector<32x2304xf32>
    %c0_9 = arith.constant 0 : index
    %c0_10 = arith.constant 0 : index
    %17 = vector.load %arg5[%c0_9, %c0_10] : memref<32x1xf32, #tpu.memory_space<vmem>>, vector<32x1xf32>
    %18 = vector.broadcast %17 : vector<32x1xf32> to vector<32x2304xf32>
    %19 = arith.addf %16, %18 : vector<32x2304xf32>
    %cst_11 = arith.constant 0.000000e+00 : f32
    %20 = vector.broadcast %cst_11 : f32 to vector<32x2304xf32>
    %21 = arith.maximumf %19, %20 : vector<32x2304xf32>
    %22 = vector.extract_strided_slice %21 {offsets = [0, 0], sizes = [32, 1152], strides = [1, 1]} : vector<32x2304xf32> to vector<32x1152xf32>
    %23 = vector.extract_strided_slice %21 {offsets = [0, 1152], sizes = [32, 1152], strides = [1, 1]} : vector<32x2304xf32> to vector<32x1152xf32>
    %24 = arith.maximumf %22, %23 : vector<32x1152xf32>
    %c0_12 = arith.constant 0 : index
    %c0_13 = arith.constant 0 : index
    %25 = vector.load %arg6[%c0_12, %c0_13] : memref<64x32xbf16, #tpu.memory_space<vmem>>, vector<64x32xbf16>
    %26 = arith.truncf %24 : vector<32x1152xf32> to vector<32x1152xbf16>
    %cst_14 = arith.constant dense<0.000000e+00> : vector<64x1152xf32>
    %27 = tpu.matmul %25, %26, %cst_14 {dimension_numbers = #tpu.dot_dimension_numbers<[1], [0], [0], [1], [0, 0, 1, 1], [], []>} : vector<64x32xbf16>, vector<32x1152xbf16>, vector<64x1152xf32> -> vector<64x1152xf32>
    %c0_15 = arith.constant 0 : index
    %c0_16 = arith.constant 0 : index
    %28 = vector.load %arg7[%c0_15, %c0_16] : memref<64x1xf32, #tpu.memory_space<vmem>>, vector<64x1xf32>
    %29 = vector.broadcast %28 : vector<64x1xf32> to vector<64x1152xf32>
    %30 = arith.addf %27, %29 : vector<64x1152xf32>
    %cst_17 = arith.constant 0.000000e+00 : f32
    %31 = vector.broadcast %cst_17 : f32 to vector<64x1152xf32>
    %32 = arith.maximumf %30, %31 : vector<64x1152xf32>
    %33 = vector.extract_strided_slice %32 {offsets = [0, 0], sizes = [64, 512], strides = [1, 1]} : vector<64x1152xf32> to vector<64x512xf32>
    %34 = vector.extract_strided_slice %32 {offsets = [0, 512], sizes = [64, 512], strides = [1, 1]} : vector<64x1152xf32> to vector<64x512xf32>
    %35 = arith.maximumf %33, %34 : vector<64x512xf32>
    %c0_18 = arith.constant 0 : index
    %c0_19 = arith.constant 0 : index
    %36 = vector.load %arg8[%c0_18, %c0_19] : memref<128x64xbf16, #tpu.memory_space<vmem>>, vector<128x64xbf16>
    %37 = arith.truncf %35 : vector<64x512xf32> to vector<64x512xbf16>
    %cst_20 = arith.constant dense<0.000000e+00> : vector<128x512xf32>
    %38 = tpu.matmul %36, %37, %cst_20 {dimension_numbers = #tpu.dot_dimension_numbers<[1], [0], [0], [1], [0, 0, 1, 1], [], []>} : vector<128x64xbf16>, vector<64x512xbf16>, vector<128x512xf32> -> vector<128x512xf32>
    %c0_21 = arith.constant 0 : index
    %c0_22 = arith.constant 0 : index
    %39 = vector.load %arg9[%c0_21, %c0_22] : memref<128x1xf32, #tpu.memory_space<vmem>>, vector<128x1xf32>
    %40 = vector.broadcast %39 : vector<128x1xf32> to vector<128x512xf32>
    %41 = arith.addf %38, %40 : vector<128x512xf32>
    %cst_23 = arith.constant 0.000000e+00 : f32
    %42 = vector.broadcast %cst_23 : f32 to vector<128x512xf32>
    %43 = arith.maximumf %41, %42 : vector<128x512xf32>
    %44 = vector.extract_strided_slice %43 {offsets = [0, 0], sizes = [128, 256], strides = [1, 1]} : vector<128x512xf32> to vector<128x256xf32>
    %45 = vector.extract_strided_slice %43 {offsets = [0, 256], sizes = [128, 256], strides = [1, 1]} : vector<128x512xf32> to vector<128x256xf32>
    %46 = arith.maximumf %44, %45 : vector<128x256xf32>
    %c0_24 = arith.constant 0 : index
    %c0_25 = arith.constant 0 : index
    %47 = vector.load %arg10[%c0_24, %c0_25] : memref<2x128xf32, #tpu.memory_space<vmem>>, vector<2x128xf32>
    %48 = vector.extract_strided_slice %46 {offsets = [0, 0], sizes = [128, 128], strides = [1, 1]} : vector<128x256xf32> to vector<128x128xf32>
    %cst_26 = arith.constant dense<0.000000e+00> : vector<2x128xf32>
    %49 = tpu.matmul %47, %48, %cst_26 {dimension_numbers = #tpu.dot_dimension_numbers<[1], [0], [0], [1], [0, 0, 1, 1], [], []>} : vector<2x128xf32>, vector<128x128xf32>, vector<2x128xf32> -> vector<2x128xf32>
    %c0_27 = arith.constant 0 : index
    %c0_28 = arith.constant 0 : index
    %50 = vector.load %arg11[%c0_27, %c0_28] : memref<2x128xf32, #tpu.memory_space<vmem>>, vector<2x128xf32>
    %51 = vector.extract_strided_slice %46 {offsets = [0, 128], sizes = [128, 128], strides = [1, 1]} : vector<128x256xf32> to vector<128x128xf32>
    %cst_29 = arith.constant dense<0.000000e+00> : vector<2x128xf32>
    %52 = tpu.matmul %50, %51, %cst_29 {dimension_numbers = #tpu.dot_dimension_numbers<[1], [0], [0], [1], [0, 0, 1, 1], [], []>} : vector<2x128xf32>, vector<128x128xf32>, vector<2x128xf32> -> vector<2x128xf32>
    %53 = arith.addf %49, %52 : vector<2x128xf32>
    %c0_30 = arith.constant 0 : index
    %c0_31 = arith.constant 0 : index
    %54 = vector.load %arg12[%c0_30, %c0_31] : memref<2x1xf32, #tpu.memory_space<vmem>>, vector<2x1xf32>
    %55 = vector.broadcast %54 : vector<2x1xf32> to vector<2x128xf32>
    %56 = arith.addf %53, %55 : vector<2x128xf32>
    %57 = arith.negf %56 : vector<2x128xf32>
    %58 = math.exp %57 : vector<2x128xf32>
    %cst_32 = arith.constant 1.000000e+00 : f32
    %59 = vector.broadcast %cst_32 : f32 to vector<2x128xf32>
    %60 = arith.addf %59, %58 : vector<2x128xf32>
    %61 = arith.divf %59, %60 : vector<2x128xf32>
    %c0_33 = arith.constant 0 : index
    %c0_34 = arith.constant 0 : index
    %c0_35 = arith.constant 0 : index
    %62 = vector.load %arg13[%c0_33, %c0_34, %c0_35] : memref<1x2x128xf32, #tpu.memory_space<vmem>>, vector<1x2x128xf32>
    %63 = vector.shape_cast %62 : vector<1x2x128xf32> to vector<2x128xf32>
    %64 = vector.shape_cast %61 : vector<2x128xf32> to vector<1x2x128xf32>
    tpu.vector_store %arg13[%c0_33, %c0_34, %c0_35], %64 {strides = array<i32>} : memref<1x2x128xf32, #tpu.memory_space<vmem>>, vector<1x2x128xf32>,
    return
  }
  func.func @transform_0(%arg0: i32) -> (i32, i32, i32) {
    %c0_i32 = arith.constant 0 : i32
    %c0_i32_0 = arith.constant 0 : i32
    %c0_i32_1 = arith.constant 0 : i32
    return %arg0, %c0_i32, %c0_i32_0 : i32, i32, i32
  }
  func.func @transform_1(%arg0: i32) -> (i32, i32) {
    %c0_i32 = arith.constant 0 : i32
    %c0_i32_0 = arith.constant 0 : i32
    %c0_i32_1 = arith.constant 0 : i32
    return %c0_i32, %c0_i32_0 : i32, i32
  }
  func.func @transform_2(%arg0: i32) -> (i32, i32) {
    %c0_i32 = arith.constant 0 : i32
    %c0_i32_0 = arith.constant 0 : i32
    %c0_i32_1 = arith.constant 0 : i32
    return %c0_i32, %c0_i32_0 : i32, i32
  }
  func.func @transform_3(%arg0: i32) -> (i32, i32) {
    %c0_i32 = arith.constant 0 : i32
    %c0_i32_0 = arith.constant 0 : i32
    %c0_i32_1 = arith.constant 0 : i32
    return %c0_i32, %c0_i32_0 : i32, i32
  }
  func.func @transform_4(%arg0: i32) -> (i32, i32) {
    %c0_i32 = arith.constant 0 : i32
    %c0_i32_0 = arith.constant 0 : i32
    %c0_i32_1 = arith.constant 0 : i32
    return %c0_i32, %c0_i32_0 : i32, i32
  }
  func.func @transform_5(%arg0: i32) -> (i32, i32) {
    %c0_i32 = arith.constant 0 : i32
    %c0_i32_0 = arith.constant 0 : i32
    %c0_i32_1 = arith.constant 0 : i32
    return %c0_i32, %c0_i32_0 : i32, i32
  }
  func.func @transform_6(%arg0: i32) -> (i32, i32) {
    %c0_i32 = arith.constant 0 : i32
    %c0_i32_0 = arith.constant 0 : i32
    %c0_i32_1 = arith.constant 0 : i32
    return %c0_i32, %c0_i32_0 : i32, i32
  }
  func.func @transform_7(%arg0: i32) -> (i32, i32) {
    %c0_i32 = arith.constant 0 : i32
    %c0_i32_0 = arith.constant 0 : i32
    %c0_i32_1 = arith.constant 0 : i32
    return %c0_i32, %c0_i32_0 : i32, i32
  }
  func.func @transform_8(%arg0: i32) -> (i32, i32) {
    %c0_i32 = arith.constant 0 : i32
    %c0_i32_0 = arith.constant 0 : i32
    %c0_i32_1 = arith.constant 0 : i32
    return %c0_i32, %c0_i32_0 : i32, i32
  }
  func.func @transform_9(%arg0: i32) -> (i32, i32) {
    %c0_i32 = arith.constant 0 : i32
    %c0_i32_0 = arith.constant 0 : i32
    %c0_i32_1 = arith.constant 0 : i32
    return %c0_i32, %c0_i32_0 : i32, i32
  }
  func.func @transform_10(%arg0: i32) -> (i32, i32) {
    %c0_i32 = arith.constant 0 : i32
    %c0_i32_0 = arith.constant 0 : i32
    %c0_i32_1 = arith.constant 0 : i32
    return %c0_i32, %c0_i32_0 : i32, i32
  }
  func.func @transform_11(%arg0: i32) -> (i32, i32) {
    %c0_i32 = arith.constant 0 : i32
    %c0_i32_0 = arith.constant 0 : i32
    %c0_i32_1 = arith.constant 0 : i32
    return %c0_i32, %c0_i32_0 : i32, i32
  }
  func.func @transform_12(%arg0: i32) -> (i32, i32, i32) {
    %c0_i32 = arith.constant 0 : i32
    %c0_i32_0 = arith.constant 0 : i32
    %c0_i32_1 = arith.constant 0 : i32
    return %arg0, %c0_i32, %c0_i32_0 : i32, i32, i32
  }
}

</mosaic_0001>

<llo_original>
// kernel: tpu_custom_call.1
$region0: #{tpu_custom_call.1}
  #allocation0 [shape = 'u32[]', space=smem, size = 0x4, offset = 0x4, fixed_abs, tag = 'smem constant byte address 0x4 - core index']
  #allocation1 [shape = 'u32[72,128]{1,0:T(1,128)}', space=vmem, size = 0x9000, scoped, tag = 'internal scratch']
  %s0 = inlined_call_operand.vmem [shape: f32[1,1,4608], index: 0, kind: input, shape index: {}]
  %s1 = inlined_call_operand.vmem [shape: f32[16,1], index: 1, kind: input, shape index: {}]
  %s2 = inlined_call_operand.vmem [shape: f32[16,1], index: 2, kind: input, shape index: {}]
  %s3 = inlined_call_operand.vmem [shape: bf16[32,16], index: 3, kind: input, shape index: {}]
  %s4 = inlined_call_operand.vmem [shape: f32[32,1], index: 4, kind: input, shape index: {}]
  %s5 = inlined_call_operand.vmem [shape: bf16[64,32], index: 5, kind: input, shape index: {}]
  %s6 = inlined_call_operand.vmem [shape: f32[64,1], index: 6, kind: input, shape index: {}]
  %s7 = inlined_call_operand.vmem [shape: bf16[128,64], index: 7, kind: input, shape index: {}]
  %s8 = inlined_call_operand.vmem [shape: f32[128,1], index: 8, kind: input, shape index: {}]
  %s9 = inlined_call_operand.vmem [shape: f32[2,128], index: 9, kind: input, shape index: {}]
  %s10 = inlined_call_operand.vmem [shape: f32[2,128], index: 10, kind: input, shape index: {}]
  %s11 = inlined_call_operand.vmem [shape: f32[2,1], index: 11, kind: input, shape index: {}]
  %s12 = inlined_call_operand.hbm [shape: f32[1,2,128], index: 12, kind: output, shape index: {}]
  %s13 = sld [smem:[#allocation0]]
  $region58: #{tpu_custom_call.1} parent=0
    _
  %s15 = ssub.s32 1, %s13
  %s16 = scalar_select 0, %s15, %s13
  $region1: #{tpu_custom_call.1} parent=0
    #allocation2 [shape = 'u8[1024]{0}', space=vmem, size = 0x400, scoped, tag = 'output window, operand 0, single buffered']
    #allocation3 [shape = 's32[1]{0}', space=sflag, size = 0x4, scoped, tag = 'scoped memory for tpu_custom_call.1']
    %17 = vsyncpa [#allocation3], 0
    // Predicated region
    $region2: #{tpu_custom_call.1} parent=1 // pred_check
      _
    $region3: #{tpu_custom_call.1} parent=1 // pred_check_branch
      %19 = sbr.rel (0) target = $region5
    $region4: #{tpu_custom_call.1} parent=1 // pred_region
      _
    $region5: #{tpu_custom_call.1} parent=1 // pred_fallthru
      _
    // Predicated region
    $region6: #{tpu_custom_call.1} parent=1 // pred_check
      _
    $region7: #{tpu_custom_call.1} parent=1 // pred_check_branch
      %21 = sbr.rel (0) target = $region9
    $region8: #{tpu_custom_call.1} parent=1 // pred_region
      _
    $region9: #{tpu_custom_call.1} parent=1 // pred_fallthru
      _
    // Predicated region
    $region10: #{tpu_custom_call.1} parent=1 // pred_check
      _
    $region11: #{tpu_custom_call.1} parent=1 // pred_check_branch
      %23 = sbr.rel (0) target = $region13
    $region12: #{tpu_custom_call.1} parent=1 // pred_region
      _
    $region13: #{tpu_custom_call.1} parent=1 // pred_fallthru
      _
    // Predicated region
    $region14: #{tpu_custom_call.1} parent=1 // pred_check
      _
    $region15: #{tpu_custom_call.1} parent=1 // pred_check_branch
      %25 = sbr.rel (0) target = $region17
    $region16: #{tpu_custom_call.1} parent=1 // pred_region
      _
    $region17: #{tpu_custom_call.1} parent=1 // pred_fallthru
      _
    // Predicated region
    $region18: #{tpu_custom_call.1} parent=1 // pred_check
      _
    $region19: #{tpu_custom_call.1} parent=1 // pred_check_branch
      %27 = sbr.rel (0) target = $region21
    $region20: #{tpu_custom_call.1} parent=1 // pred_region
      _
    $region21: #{tpu_custom_call.1} parent=1 // pred_fallthru
      _
    // Predicated region
    $region22: #{tpu_custom_call.1} parent=1 // pred_check
      _
    $region23: #{tpu_custom_call.1} parent=1 // pred_check_branch
      %29 = sbr.rel (0) target = $region25
    $region24: #{tpu_custom_call.1} parent=1 // pred_region
      _
    $region25: #{tpu_custom_call.1} parent=1 // pred_fallthru
      _
    // Predicated region
    $region26: #{tpu_custom_call.1} parent=1 // pred_check
      _
    $region27: #{tpu_custom_call.1} parent=1 // pred_check_branch
      %31 = sbr.rel (0) target = $region29
    $region28: #{tpu_custom_call.1} parent=1 // pred_region
      _
    $region29: #{tpu_custom_call.1} parent=1 // pred_fallthru
      _
    // Predicated region
    $region30: #{tpu_custom_call.1} parent=1 // pred_check
      _
    $region31: #{tpu_custom_call.1} parent=1 // pred_check_branch
      %33 = sbr.rel (0) target = $region33
    $region32: #{tpu_custom_call.1} parent=1 // pred_region
      _
    $region33: #{tpu_custom_call.1} parent=1 // pred_fallthru
      _
    // Predicated region
    $region34: #{tpu_custom_call.1} parent=1 // pred_check
      _
    $region35: #{tpu_custom_call.1} parent=1 // pred_check_branch
      %35 = sbr.rel (0) target = $region37
    $region36: #{tpu_custom_call.1} parent=1 // pred_region
      _
    $region37: #{tpu_custom_call.1} parent=1 // pred_fallthru
      _
    // Predicated region
    $region38: #{tpu_custom_call.1} parent=1 // pred_check
      _
    $region39: #{tpu_custom_call.1} parent=1 // pred_check_branch
      %37 = sbr.rel (0) target = $region41
    $region40: #{tpu_custom_call.1} parent=1 // pred_region
      _
    $region41: #{tpu_custom_call.1} parent=1 // pred_fallthru
      _
    // Predicated region
    $region42: #{tpu_custom_call.1} parent=1 // pred_check
      _
    $region43: #{tpu_custom_call.1} parent=1 // pred_check_branch
      %39 = sbr.rel (0) target = $region45
    $region44: #{tpu_custom_call.1} parent=1 // pred_region
      _
    $region45: #{tpu_custom_call.1} parent=1 // pred_fallthru
      _
    // Predicated region
    $region46: #{tpu_custom_call.1} parent=1 // pred_check
      _
    $region47: #{tpu_custom_call.1} parent=1 // pred_check_branch
      %41 = sbr.rel (0) target = $region49
    $region48: #{tpu_custom_call.1} parent=1 // pred_region
      _
    $region49: #{tpu_custom_call.1} parent=1 // pred_fallthru
      _
    %v43 = vld [vmem:[%s0] sm:$0xff]
    %v44 = vld [vmem:[%s0 + $0x8] sm:$0xff]
    %v45 = vld [vmem:[%s0 + $0x10] sm:$0xff]
    %v46 = vld [vmem:[%s0 + $0x18] sm:$0xff]
    %v47 = vld [vmem:[%s0 + $0x20] sm:$0xf]
    %v48 = vld [vmem:[%s1] sm:$0xff]
    %v49 = vld [vmem:[%s1 + $0x8] sm:$0xff]
    %51 = vset.pattern.permute.xlu0 0
    %52 = vperm.xlu0 %51, %v48
    %v53 = vpop.permute.xlu0 %52
    %56 = vset.pattern.permute.xlu0 0
    %57 = vperm.xlu0 %56, %v49
    %v58 = vpop.permute.xlu0 %57
    %v65 = vperm.slane %v43, 0
    %v66 = vperm.slane %v43, 1
    %v67 = vperm.slane %v43, 2
    %v68 = vperm.slane %v43, 3
    %v69 = vperm.slane %v43, 4
    %v70 = vperm.slane %v43, 5
    %v71 = vperm.slane %v43, 6
    %v72 = vperm.slane %v43, 7
    %v73 = vperm.slane %v44, 1
    %v74 = vperm.slane %v44, 2
    %v75 = vperm.slane %v44, 3
    %v76 = vperm.slane %v44, 4
    %v77 = vperm.slane %v44, 5
    %v78 = vperm.slane %v44, 6
    %v79 = vperm.slane %v44, 7
    %v80 = vperm.slane %v45, 0
    %v81 = vperm.slane %v45, 2
    %v82 = vperm.slane %v45, 3
    %v83 = vperm.slane %v45, 4
    %v84 = vperm.slane %v45, 5
    %v85 = vperm.slane %v45, 6
    %v86 = vperm.slane %v45, 7
    %v87 = vperm.slane %v46, 0
    %v88 = vperm.slane %v46, 1
    %v89 = vperm.slane %v46, 3
    %v90 = vperm.slane %v46, 4
    %v91 = vperm.slane %v46, 5
    %v92 = vperm.slane %v46, 6
    %v93 = vperm.slane %v46, 7
    %v94 = vperm.slane %v47, 0
    %v95 = vperm.slane %v47, 1
    %v96 = vperm.slane %v47, 2
    %v129 = vmul.f32 %v53, %v65
    %v130 = vmul.f32 %v53, %v66
    %v131 = vmul.f32 %v53, %v67
    %v132 = vmul.f32 %v53, %v68
    %v133 = vmul.f32 %v53, %v69
    %v134 = vmul.f32 %v53, %v70
    %v135 = vmul.f32 %v53, %v71
    %v136 = vmul.f32 %v53, %v72
    %v137 = vmul.f32 %v53, %v73
    %v138 = vmul.f32 %v53, %v74
    %v139 = vmul.f32 %v53, %v75
    %v140 = vmul.f32 %v53, %v76
    %v141 = vmul.f32 %v53, %v77
    %v142 = vmul.f32 %v53, %v78
    %v143 = vmul.f32 %v53, %v79
    %v144 = vmul.f32 %v53, %v80
    %v145 = vmul.f32 %v53, %v81
    %v146 = vmul.f32 %v53, %v82
    %v147 = vmul.f32 %v53, %v83
    %v148 = vmul.f32 %v53, %v84
    %v149 = vmul.f32 %v53, %v85
    %v150 = vmul.f32 %v53, %v86
    %v151 = vmul.f32 %v53, %v87
    %v152 = vmul.f32 %v53, %v88
    %v153 = vmul.f32 %v53, %v89
    %v154 = vmul.f32 %v53, %v90
    %v155 = vmul.f32 %v53, %v91
    %v156 = vmul.f32 %v53, %v92
    %v157 = vmul.f32 %v53, %v93
    %v158 = vmul.f32 %v53, %v94
    %v159 = vmul.f32 %v53, %v95
    %v160 = vmul.f32 %v53, %v96
    %v161 = vmul.f32 %v58, %v65
    %v162 = vmul.f32 %v58, %v66
    %v163 = vmul.f32 %v58, %v67
    %v164 = vmul.f32 %v58, %v68
    %v165 = vmul.f32 %v58, %v69
    %v166 = vmul.f32 %v58, %v70
    %v167 = vmul.f32 %v58, %v71
    %v168 = vmul.f32 %v58, %v72
    %v169 = vmul.f32 %v58, %v73
    %v170 = vmul.f32 %v58, %v74
    %v171 = vmul.f32 %v58, %v75
    %v172 = vmul.f32 %v58, %v76
    %v173 = vmul.f32 %v58, %v77
    %v174 = vmul.f32 %v58, %v78
    %v175 = vmul.f32 %v58, %v79
    %v176 = vmul.f32 %v58, %v80
    %v177 = vmul.f32 %v58, %v81
    %v178 = vmul.f32 %v58, %v82
    %v179 = vmul.f32 %v58, %v83
    %v180 = vmul.f32 %v58, %v84
    %v181 = vmul.f32 %v58, %v85
    %v182 = vmul.f32 %v58, %v86
    %v183 = vmul.f32 %v58, %v87
    %v184 = vmul.f32 %v58, %v88
    %v185 = vmul.f32 %v58, %v89
    %v186 = vmul.f32 %v58, %v90
    %v187 = vmul.f32 %v58, %v91
    %v188 = vmul.f32 %v58, %v92
    %v189 = vmul.f32 %v58, %v93
    %v190 = vmul.f32 %v58, %v94
    %v191 = vmul.f32 %v58, %v95
    %v192 = vmul.f32 %v58, %v96
    %v193 = vld [vmem:[%s2] sm:$0xff]
    %v194 = vld [vmem:[%s2 + $0x8] sm:$0xff]
    %196 = vset.pattern.permute.xlu0 0
    %197 = vperm.xlu0 %196, %v193
    %v198 = vpop.permute.xlu0 %197
    %201 = vset.pattern.permute.xlu0 0
    %202 = vperm.xlu0 %201, %v194
    %v203 = vpop.permute.xlu0 %202
    %v205 = vadd.f32 %v129, %v198
    %v206 = vadd.f32 %v130, %v198
    %v207 = vadd.f32 %v131, %v198
    %v208 = vadd.f32 %v132, %v198
    %v209 = vadd.f32 %v133, %v198
    %v210 = vadd.f32 %v134, %v198
    %v211 = vadd.f32 %v135, %v198
    %v212 = vadd.f32 %v136, %v198
    %v213 = vadd.f32 %v137, %v198
    %v214 = vadd.f32 %v138, %v198
    %v215 = vadd.f32 %v139, %v198
    %v216 = vadd.f32 %v140, %v198
    %v217 = vadd.f32 %v141, %v198
    %v218 = vadd.f32 %v142, %v198
    %v219 = vadd.f32 %v143, %v198
    %v220 = vadd.f32 %v144, %v198
    %v221 = vadd.f32 %v145, %v198
    %v222 = vadd.f32 %v146, %v198
    %v223 = vadd.f32 %v147, %v198
    %v224 = vadd.f32 %v148, %v198
    %v225 = vadd.f32 %v149, %v198
    %v226 = vadd.f32 %v150, %v198
    %v227 = vadd.f32 %v151, %v198
    %v228 = vadd.f32 %v152, %v198
    %v229 = vadd.f32 %v153, %v198
    %v230 = vadd.f32 %v154, %v198
    %v231 = vadd.f32 %v155, %v198
    %v232 = vadd.f32 %v156, %v198
    %v233 = vadd.f32 %v157, %v198
    %v234 = vadd.f32 %v158, %v198
    %v235 = vadd.f32 %v159, %v198
    %v236 = vadd.f32 %v160, %v198
    %v237 = vadd.f32 %v161, %v203
    %v238 = vadd.f32 %v162, %v203
    %v239 = vadd.f32 %v163, %v203
    %v240 = vadd.f32 %v164, %v203
    %v241 = vadd.f32 %v165, %v203
    %v242 = vadd.f32 %v166, %v203
    %v243 = vadd.f32 %v167, %v203
    %v244 = vadd.f32 %v168, %v203
    %v245 = vadd.f32 %v169, %v203
    %v246 = vadd.f32 %v170, %v203
    %v247 = vadd.f32 %v171, %v203
    %v248 = vadd.f32 %v172, %v203
    %v249 = vadd.f32 %v173, %v203
    %v250 = vadd.f32 %v174, %v203
    %v251 = vadd.f32 %v175, %v203
    %v252 = vadd.f32 %v176, %v203
    %v253 = vadd.f32 %v177, %v203
    %v254 = vadd.f32 %v178, %v203
    %v255 = vadd.f32 %v179, %v203
    %v256 = vadd.f32 %v180, %v203
    %v257 = vadd.f32 %v181, %v203
    %v258 = vadd.f32 %v182, %v203
    %v259 = vadd.f32 %v183, %v203
    %v260 = vadd.f32 %v184, %v203
    %v261 = vadd.f32 %v185, %v203
    %v262 = vadd.f32 %v186, %v203
    %v263 = vadd.f32 %v187, %v203
    %v264 = vadd.f32 %v188, %v203
    %v265 = vadd.f32 %v189, %v203
    %v266 = vadd.f32 %v190, %v203
    %v267 = vadd.f32 %v191, %v203
    %v268 = vadd.f32 %v192, %v203
    %v269 = vmax.f32 %v205, 0.0
    %v270 = vmax.f32 %v206, 0.0
    %v271 = vmax.f32 %v207, 0.0
    %v272 = vmax.f32 %v208, 0.0
    %v273 = vmax.f32 %v209, 0.0
    %v274 = vmax.f32 %v210, 0.0
    %v275 = vmax.f32 %v211, 0.0
    %v276 = vmax.f32 %v212, 0.0
    %v277 = vmax.f32 %v213, 0.0
    %v278 = vmax.f32 %v214, 0.0
    %v279 = vmax.f32 %v215, 0.0
    %v280 = vmax.f32 %v216, 0.0
    %v281 = vmax.f32 %v217, 0.0
    %v282 = vmax.f32 %v218, 0.0
    %v283 = vmax.f32 %v219, 0.0
    %v284 = vmax.f32 %v220, 0.0
    %v285 = vmax.f32 %v221, 0.0
    %v286 = vmax.f32 %v222, 0.0
    %v287 = vmax.f32 %v223, 0.0
    %v288 = vmax.f32 %v224, 0.0
    %v289 = vmax.f32 %v225, 0.0
    %v290 = vmax.f32 %v226, 0.0
    %v291 = vmax.f32 %v227, 0.0
    %v292 = vmax.f32 %v228, 0.0
    %v293 = vmax.f32 %v229, 0.0
    %v294 = vmax.f32 %v230, 0.0
    %v295 = vmax.f32 %v231, 0.0
    %v296 = vmax.f32 %v232, 0.0
    %v297 = vmax.f32 %v233, 0.0
    %v298 = vmax.f32 %v234, 0.0
    %v299 = vmax.f32 %v235, 0.0
    %v300 = vmax.f32 %v236, 0.0
    %v301 = vmax.f32 %v237, 0.0
    %v302 = vmax.f32 %v238, 0.0
    %v303 = vmax.f32 %v239, 0.0
    %v304 = vmax.f32 %v240, 0.0
    %v305 = vmax.f32 %v241, 0.0
    %v306 = vmax.f32 %v242, 0.0
    %v307 = vmax.f32 %v243, 0.0
    %v308 = vmax.f32 %v244, 0.0
    %v309 = vmax.f32 %v245, 0.0
    %v310 = vmax.f32 %v246, 0.0
    %v311 = vmax.f32 %v247, 0.0
    %v312 = vmax.f32 %v248, 0.0
    %v313 = vmax.f32 %v249, 0.0
    %v314 = vmax.f32 %v250, 0.0
    %v315 = vmax.f32 %v251, 0.0
    %v316 = vmax.f32 %v252, 0.0
    %v317 = vmax.f32 %v253, 0.0
    %v318 = vmax.f32 %v254, 0.0
    %v319 = vmax.f32 %v255, 0.0
    %v320 = vmax.f32 %v256, 0.0
    %v321 = vmax.f32 %v257, 0.0
    %v322 = vmax.f32 %v258, 0.0
    %v323 = vmax.f32 %v259, 0.0
    %v324 = vmax.f32 %v260, 0.0
    %v325 = vmax.f32 %v261, 0.0
    %v326 = vmax.f32 %v262, 0.0
    %v327 = vmax.f32 %v263, 0.0
    %v328 = vmax.f32 %v264, 0.0
    %v329 = vmax.f32 %v265, 0.0
    %v330 = vmax.f32 %v266, 0.0
    %v331 = vmax.f32 %v267, 0.0
    %v332 = vmax.f32 %v268, 0.0
    %v333 = vmax.f32 %v269, %v285
    %v334 = vmax.f32 %v270, %v286
    %v335 = vmax.f32 %v271, %v287
    %v336 = vmax.f32 %v272, %v288
    %v337 = vmax.f32 %v273, %v289
    %v338 = vmax.f32 %v274, %v290
    %v339 = vmax.f32 %v275, %v291
    %v340 = vmax.f32 %v276, %v292
    %v341 = vmax.f32 %v277, %v293
    %v342 = vmax.f32 %v278, %v294
    %v343 = vmax.f32 %v279, %v295
    %v344 = vmax.f32 %v280, %v296
    %v345 = vmax.f32 %v281, %v297
    %v346 = vmax.f32 %v282, %v298
    %v347 = vmax.f32 %v283, %v299
    %v348 = vmax.f32 %v284, %v300
    %v349 = vmax.f32 %v301, %v317
    %v350 = vmax.f32 %v302, %v318
    %v351 = vmax.f32 %v303, %v319
    %v352 = vmax.f32 %v304, %v320
    %v353 = vmax.f32 %v305, %v321
    %v354 = vmax.f32 %v306, %v322
    %v355 = vmax.f32 %v307, %v323
    %v356 = vmax.f32 %v308, %v324
    %v357 = vmax.f32 %v309, %v325
    %v358 = vmax.f32 %v310, %v326
    %v359 = vmax.f32 %v311, %v327
    %v360 = vmax.f32 %v312, %v328
    %v361 = vmax.f32 %v313, %v329
    %v362 = vmax.f32 %v314, %v330
    %v363 = vmax.f32 %v315, %v331
    %v364 = vmax.f32 %v316, %v332
    %v365 = vld [vmem:[%s3] sm:$0xf]
    %v366 = vld [vmem:[%s3 + $0x4] sm:$0xf]
    %v367 = vld [vmem:[%s3 + $0x8] sm:$0xf]
    %v368 = vld [vmem:[%s3 + $0xc] sm:$0xf]
    %v369 = vpack.c.bf16 %v349, %v333
    %v370 = vpack.c.bf16 %v350, %v334
    %v371 = vpack.c.bf16 %v351, %v335
    %v372 = vpack.c.bf16 %v352, %v336
    %v373 = vpack.c.bf16 %v353, %v337
    %v374 = vpack.c.bf16 %v354, %v338
    %v375 = vpack.c.bf16 %v355, %v339
    %v376 = vpack.c.bf16 %v356, %v340
    %v377 = vpack.c.bf16 %v357, %v341
    %v378 = vpack.c.bf16 %v358, %v342
    %v379 = vpack.c.bf16 %v359, %v343
    %v380 = vpack.c.bf16 %v360, %v344
    %v381 = vpack.c.bf16 %v361, %v345
    %v382 = vpack.c.bf16 %v362, %v346
    %v383 = vpack.c.bf16 %v363, %v347
    %v384 = vpack.c.bf16 %v364, %v348
    %v385 = vld [vmem:[%s4] sm:$0xff]
    %v386 = vld [vmem:[%s4 + $0x8] sm:$0xff]
    %v387 = vld [vmem:[%s4 + $0x10] sm:$0xff]
    %v388 = vld [vmem:[%s4 + $0x18] sm:$0xff]
    %390 = vset.pattern.permute.xlu0 0
    %391 = vperm.xlu0 %390, %v385
    %v392 = vpop.permute.xlu0 %391
    %395 = vset.pattern.permute.xlu0 0
    %396 = vperm.xlu0 %395, %v386
    %v397 = vpop.permute.xlu0 %396
    %400 = vset.pattern.permute.xlu0 0
    %401 = vperm.xlu0 %400, %v387
    %v402 = vpop.permute.xlu0 %401
    %405 = vset.pattern.permute.xlu0 0
    %406 = vperm.xlu0 %405, %v388
    %v407 = vpop.permute.xlu0 %406
    %v413 = vunpack.c.l.b16 %v365
    %v414 = vunpack.c.l.b16 %v366
    %v415 = vunpack.c.l.b16 %v367
    %v416 = vunpack.c.l.b16 %v368
    %v417 = vpack.c.b16 %v414, %v413
    %v418 = vpack.c.b16 %v416, %v415
    %vm419 = vcmask 130048
    %v421 = vsel %vm419, %v417, 0
    %v424 = vsel %vm419, %v418, 0
    %426 = vmatpush.bf16.msra.mxu0 0
    %427 = vmatpush.bf16.msra.mxu0 0
    %428 = vmatpush.bf16.msra.mxu0 0
    %429 = vmatpush.bf16.msra.mxu0 0
    %430 = vmatpush.bf16.msra.mxu0 0
    %431 = vmatpush.bf16.msra.mxu0 0
    %432 = vmatpush.bf16.msra.mxu0 0
    %433 = vmatpush.bf16.msra.mxu0 %v369
    %434 = vmatmul.bf16.gmra.mxu0 %v421
    %v435 = vpop.f32.mrf.mxu0
    %v436 = vadd.f32 %v392, %v435
    %v437 = vpop.f32.mrf.mxu0
    %v438 = vadd.f32 %v397, %v437
    %439 = vmatmul.bf16.gmra.mxu0 %v424
    %v440 = vpop.f32.mrf.mxu0
    %v441 = vadd.f32 %v402, %v440
    %v442 = vpop.f32.mrf.mxu0
    %v443 = vadd.f32 %v407, %v442
    %444 = vdwg.mxu0
    %445 = vmatpush.bf16.msra.mxu0 0
    %446 = vmatpush.bf16.msra.mxu0 0
    %447 = vmatpush.bf16.msra.mxu0 0
    %448 = vmatpush.bf16.msra.mxu0 0
    %449 = vmatpush.bf16.msra.mxu0 0
    %450 = vmatpush.bf16.msra.mxu0 0
    %451 = vmatpush.bf16.msra.mxu0 0
    %452 = vmatpush.bf16.msra.mxu0 %v370
    %453 = vmatmul.bf16.gmra.mxu0 %v421
    %v454 = vpop.f32.mrf.mxu0
    %v455 = vadd.f32 %v392, %v454
    %v456 = vpop.f32.mrf.mxu0
    %v457 = vadd.f32 %v397, %v456
    %458 = vmatmul.bf16.gmra.mxu0 %v424
    %v459 = vpop.f32.mrf.mxu0
    %v460 = vadd.f32 %v402, %v459
    %v461 = vpop.f32.mrf.mxu0
    %v462 = vadd.f32 %v407, %v461
    %463 = vdwg.mxu0
    %464 = vmatpush.bf16.msra.mxu0 0
    %465 = vmatpush.bf16.msra.mxu0 0
    %466 = vmatpush.bf16.msra.mxu0 0
    %467 = vmatpush.bf16.msra.mxu0 0
    %468 = vmatpush.bf16.msra.mxu0 0
    %469 = vmatpush.bf16.msra.mxu0 0
    %470 = vmatpush.bf16.msra.mxu0 0
    %471 = vmatpush.bf16.msra.mxu0 %v371
    %472 = vmatmul.bf16.gmra.mxu0 %v421
    %v473 = vpop.f32.mrf.mxu0
    %v474 = vadd.f32 %v392, %v473
    %v475 = vpop.f32.mrf.mxu0
    %v476 = vadd.f32 %v397, %v475
    %477 = vmatmul.bf16.gmra.mxu0 %v424
    %v478 = vpop.f32.mrf.mxu0
    %v479 = vadd.f32 %v402, %v478
    %v480 = vpop.f32.mrf.mxu0
    %v481 = vadd.f32 %v407, %v480
    %482 = vdwg.mxu0
    %483 = vmatpush.bf16.msra.mxu0 0
    %484 = vmatpush.bf16.msra.mxu0 0
    %485 = vmatpush.bf16.msra.mxu0 0
    %486 = vmatpush.bf16.msra.mxu0 0
    %487 = vmatpush.bf16.msra.mxu0 0
    %488 = vmatpush.bf16.msra.mxu0 0
    %489 = vmatpush.bf16.msra.mxu0 0
    %490 = vmatpush.bf16.msra.mxu0 %v372
    %491 = vmatmul.bf16.gmra.mxu0 %v421
    %v492 = vpop.f32.mrf.mxu0
    %v493 = vadd.f32 %v392, %v492
    %v494 = vpop.f32.mrf.mxu0
    %v495 = vadd.f32 %v397, %v494
    %496 = vmatmul.bf16.gmra.mxu0 %v424
    %v497 = vpop.f32.mrf.mxu0
    %v498 = vadd.f32 %v402, %v497
    %v499 = vpop.f32.mrf.mxu0
    %v500 = vadd.f32 %v407, %v499
    %501 = vdwg.mxu0
    %502 = vmatpush.bf16.msra.mxu0 0
    %503 = vmatpush.bf16.msra.mxu0 0
    %504 = vmatpush.bf16.msra.mxu0 0
    %505 = vmatpush.bf16.msra.mxu0 0
    %506 = vmatpush.bf16.msra.mxu0 0
    %507 = vmatpush.bf16.msra.mxu0 0
    %508 = vmatpush.bf16.msra.mxu0 0
    %509 = vmatpush.bf16.msra.mxu0 %v373
    %510 = vmatmul.bf16.gmra.mxu0 %v421
    %v511 = vpop.f32.mrf.mxu0
    %v512 = vadd.f32 %v392, %v511
    %v513 = vpop.f32.mrf.mxu0
    %v514 = vadd.f32 %v397, %v513
    %515 = vmatmul.bf16.gmra.mxu0 %v424
    %v516 = vpop.f32.mrf.mxu0
    %v517 = vadd.f32 %v402, %v516
    %v518 = vpop.f32.mrf.mxu0
    %v519 = vadd.f32 %v407, %v518
    %520 = vdwg.mxu0
    %521 = vmatpush.bf16.msra.mxu0 0
    %522 = vmatpush.bf16.msra.mxu0 0
    %523 = vmatpush.bf16.msra.mxu0 0
    %524 = vmatpush.bf16.msra.mxu0 0
    %525 = vmatpush.bf16.msra.mxu0 0
    %526 = vmatpush.bf16.msra.mxu0 0
    %527 = vmatpush.bf16.msra.mxu0 0
    %528 = vmatpush.bf16.msra.mxu0 %v374
    %529 = vmatmul.bf16.gmra.mxu0 %v421
    %v530 = vpop.f32.mrf.mxu0
    %v531 = vadd.f32 %v392, %v530
    %v532 = vpop.f32.mrf.mxu0
    %v533 = vadd.f32 %v397, %v532
    %534 = vmatmul.bf16.gmra.mxu0 %v424
    %v535 = vpop.f32.mrf.mxu0
    %v536 = vadd.f32 %v402, %v535
    %v537 = vpop.f32.mrf.mxu0
    %v538 = vadd.f32 %v407, %v537
    %539 = vdwg.mxu0
    %540 = vmatpush.bf16.msra.mxu0 0
    %541 = vmatpush.bf16.msra.mxu0 0
    %542 = vmatpush.bf16.msra.mxu0 0
    %543 = vmatpush.bf16.msra.mxu0 0
    %544 = vmatpush.bf16.msra.mxu0 0
    %545 = vmatpush.bf16.msra.mxu0 0
    %546 = vmatpush.bf16.msra.mxu0 0
    %547 = vmatpush.bf16.msra.mxu0 %v375
    %548 = vmatmul.bf16.gmra.mxu0 %v421
    %v549 = vpop.f32.mrf.mxu0
    %v550 = vadd.f32 %v392, %v549
    %v551 = vpop.f32.mrf.mxu0
    %v552 = vadd.f32 %v397, %v551
    %553 = vmatmul.bf16.gmra.mxu0 %v424
    %v554 = vpop.f32.mrf.mxu0
    %v555 = vadd.f32 %v402, %v554
    %v556 = vpop.f32.mrf.mxu0
    %v557 = vadd.f32 %v407, %v556
    %558 = vdwg.mxu0
    %559 = vmatpush.bf16.msra.mxu0 0
    %560 = vmatpush.bf16.msra.mxu0 0
    %561 = vmatpush.bf16.msra.mxu0 0
    %562 = vmatpush.bf16.msra.mxu0 0
    %563 = vmatpush.bf16.msra.mxu0 0
    %564 = vmatpush.bf16.msra.mxu0 0
    %565 = vmatpush.bf16.msra.mxu0 0
    %566 = vmatpush.bf16.msra.mxu0 %v376
    %567 = vmatmul.bf16.gmra.mxu0 %v421
    %v568 = vpop.f32.mrf.mxu0
    %v569 = vadd.f32 %v392, %v568
    %v570 = vpop.f32.mrf.mxu0
    %v571 = vadd.f32 %v397, %v570
    %572 = vmatmul.bf16.gmra.mxu0 %v424
    %v573 = vpop.f32.mrf.mxu0
    %v574 = vadd.f32 %v402, %v573
    %v575 = vpop.f32.mrf.mxu0
    %v576 = vadd.f32 %v407, %v575
    %577 = vdwg.mxu0
    %578 = vmatpush.bf16.msra.mxu0 0
    %579 = vmatpush.bf16.msra.mxu0 0
    %580 = vmatpush.bf16.msra.mxu0 0
    %581 = vmatpush.bf16.msra.mxu0 0
    %582 = vmatpush.bf16.msra.mxu0 0
    %583 = vmatpush.bf16.msra.mxu0 0
    %584 = vmatpush.bf16.msra.mxu0 0
    %585 = vmatpush.bf16.msra.mxu0 %v377
    %586 = vmatmul.bf16.gmra.mxu0 %v421
    %v587 = vpop.f32.mrf.mxu0
    %v588 = vadd.f32 %v392, %v587
    %v589 = vpop.f32.mrf.mxu0
    %v590 = vadd.f32 %v397, %v589
    %591 = vmatmul.bf16.gmra.mxu0 %v424
    %v592 = vpop.f32.mrf.mxu0
    %v593 = vadd.f32 %v402, %v592
    %v594 = vpop.f32.mrf.mxu0
    %v595 = vadd.f32 %v407, %v594
    %596 = vdwg.mxu0
    %597 = vmatpush.bf16.msra.mxu0 0
    %598 = vmatpush.bf16.msra.mxu0 0
    %599 = vmatpush.bf16.msra.mxu0 0
    %600 = vmatpush.bf16.msra.mxu0 0
    %601 = vmatpush.bf16.msra.mxu0 0
    %602 = vmatpush.bf16.msra.mxu0 0
    %603 = vmatpush.bf16.msra.mxu0 0
    %604 = vmatpush.bf16.msra.mxu0 %v378
    %605 = vmatmul.bf16.gmra.mxu0 %v421
    %v606 = vpop.f32.mrf.mxu0
    %v607 = vadd.f32 %v392, %v606
    %v608 = vpop.f32.mrf.mxu0
    %v609 = vadd.f32 %v397, %v608
    %610 = vmatmul.bf16.gmra.mxu0 %v424
    %v611 = vpop.f32.mrf.mxu0
    %v612 = vadd.f32 %v402, %v611
    %v613 = vpop.f32.mrf.mxu0
    %v614 = vadd.f32 %v407, %v613
    %615 = vdwg.mxu0
    %616 = vmatpush.bf16.msra.mxu0 0
    %617 = vmatpush.bf16.msra.mxu0 0
    %618 = vmatpush.bf16.msra.mxu0 0
    %619 = vmatpush.bf16.msra.mxu0 0
    %620 = vmatpush.bf16.msra.mxu0 0
    %621 = vmatpush.bf16.msra.mxu0 0
    %622 = vmatpush.bf16.msra.mxu0 0
    %623 = vmatpush.bf16.msra.mxu0 %v379
    %624 = vmatmul.bf16.gmra.mxu0 %v421
    %v625 = vpop.f32.mrf.mxu0
    %v626 = vadd.f32 %v392, %v625
    %v627 = vpop.f32.mrf.mxu0
    %v628 = vadd.f32 %v397, %v627
    %629 = vmatmul.bf16.gmra.mxu0 %v424
    %v630 = vpop.f32.mrf.mxu0
    %v631 = vadd.f32 %v402, %v630
    %v632 = vpop.f32.mrf.mxu0
    %v633 = vadd.f32 %v407, %v632
    %634 = vdwg.mxu0
    %635 = vmatpush.bf16.msra.mxu0 0
    %636 = vmatpush.bf16.msra.mxu0 0
    %637 = vmatpush.bf16.msra.mxu0 0
    %638 = vmatpush.bf16.msra.mxu0 0
    %639 = vmatpush.bf16.msra.mxu0 0
    %640 = vmatpush.bf16.msra.mxu0 0
    %641 = vmatpush.bf16.msra.mxu0 0
    %642 = vmatpush.bf16.msra.mxu0 %v380
    %643 = vmatmul.bf16.gmra.mxu0 %v421
    %v644 = vpop.f32.mrf.mxu0
    %v645 = vadd.f32 %v392, %v644
    %v646 = vpop.f32.mrf.mxu0
    %v647 = vadd.f32 %v397, %v646
    %648 = vmatmul.bf16.gmra.mxu0 %v424
    %v649 = vpop.f32.mrf.mxu0
    %v650 = vadd.f32 %v402, %v649
    %v651 = vpop.f32.mrf.mxu0
    %v652 = vadd.f32 %v407, %v651
    %653 = vdwg.mxu0
    %654 = vmatpush.bf16.msra.mxu0 0
    %655 = vmatpush.bf16.msra.mxu0 0
    %656 = vmatpush.bf16.msra.mxu0 0
    %657 = vmatpush.bf16.msra.mxu0 0
    %658 = vmatpush.bf16.msra.mxu0 0
    %659 = vmatpush.bf16.msra.mxu0 0
    %660 = vmatpush.bf16.msra.mxu0 0
    %661 = vmatpush.bf16.msra.mxu0 %v381
    %662 = vmatmul.bf16.gmra.mxu0 %v421
    %v663 = vpop.f32.mrf.mxu0
    %v664 = vadd.f32 %v392, %v663
    %v665 = vpop.f32.mrf.mxu0
    %v666 = vadd.f32 %v397, %v665
    %667 = vmatmul.bf16.gmra.mxu0 %v424
    %v668 = vpop.f32.mrf.mxu0
    %v669 = vadd.f32 %v402, %v668
    %v670 = vpop.f32.mrf.mxu0
    %v671 = vadd.f32 %v407, %v670
    %672 = vdwg.mxu0
    %673 = vmatpush.bf16.msra.mxu0 0
    %674 = vmatpush.bf16.msra.mxu0 0
    %675 = vmatpush.bf16.msra.mxu0 0
    %676 = vmatpush.bf16.msra.mxu0 0
    %677 = vmatpush.bf16.msra.mxu0 0
    %678 = vmatpush.bf16.msra.mxu0 0
    %679 = vmatpush.bf16.msra.mxu0 0
    %680 = vmatpush.bf16.msra.mxu0 %v382
    %681 = vmatmul.bf16.gmra.mxu0 %v421
    %v682 = vpop.f32.mrf.mxu0
    %v683 = vadd.f32 %v392, %v682
    %v684 = vpop.f32.mrf.mxu0
    %v685 = vadd.f32 %v397, %v684
    %686 = vmatmul.bf16.gmra.mxu0 %v424
    %v687 = vpop.f32.mrf.mxu0
    %v688 = vadd.f32 %v402, %v687
    %v689 = vpop.f32.mrf.mxu0
    %v690 = vadd.f32 %v407, %v689
    %691 = vdwg.mxu0
    %692 = vmatpush.bf16.msra.mxu0 0
    %693 = vmatpush.bf16.msra.mxu0 0
    %694 = vmatpush.bf16.msra.mxu0 0
    %695 = vmatpush.bf16.msra.mxu0 0
    %696 = vmatpush.bf16.msra.mxu0 0
    %697 = vmatpush.bf16.msra.mxu0 0
    %698 = vmatpush.bf16.msra.mxu0 0
    %699 = vmatpush.bf16.msra.mxu0 %v383
    %700 = vmatmul.bf16.gmra.mxu0 %v421
    %v701 = vpop.f32.mrf.mxu0
    %v702 = vadd.f32 %v392, %v701
    %v703 = vpop.f32.mrf.mxu0
    %v704 = vadd.f32 %v397, %v703
    %705 = vmatmul.bf16.gmra.mxu0 %v424
    %v706 = vpop.f32.mrf.mxu0
    %v707 = vadd.f32 %v402, %v706
    %v708 = vpop.f32.mrf.mxu0
    %v709 = vadd.f32 %v407, %v708
    %710 = vdwg.mxu0
    %711 = vmatpush.bf16.msra.mxu0 0
    %712 = vmatpush.bf16.msra.mxu0 0
    %713 = vmatpush.bf16.msra.mxu0 0
    %714 = vmatpush.bf16.msra.mxu0 0
    %715 = vmatpush.bf16.msra.mxu0 0
    %716 = vmatpush.bf16.msra.mxu0 0
    %717 = vmatpush.bf16.msra.mxu0 0
    %718 = vmatpush.bf16.msra.mxu0 %v384
    %719 = vmatmul.bf16.gmra.mxu0 %v421
    %v720 = vpop.f32.mrf.mxu0
    %v721 = vadd.f32 %v392, %v720
    %v722 = vpop.f32.mrf.mxu0
    %v723 = vadd.f32 %v397, %v722
    %724 = vmatmul.bf16.gmra.mxu0 %v424
    %v725 = vpop.f32.mrf.mxu0
    %v726 = vadd.f32 %v402, %v725
    %v727 = vpop.f32.mrf.mxu0
    %v728 = vadd.f32 %v407, %v727
    %729 = vdwg.mxu0
    %v730 = vmax.f32 %v436, 0.0
    %v731 = vmax.f32 %v455, 0.0
    %v732 = vmax.f32 %v474, 0.0
    %v733 = vmax.f32 %v493, 0.0
    %v734 = vmax.f32 %v512, 0.0
    %v735 = vmax.f32 %v531, 0.0
    %v736 = vmax.f32 %v550, 0.0
    %v737 = vmax.f32 %v569, 0.0
    %v738 = vmax.f32 %v588, 0.0
    %v739 = vmax.f32 %v607, 0.0
    %v740 = vmax.f32 %v626, 0.0
    %v741 = vmax.f32 %v645, 0.0
    %v742 = vmax.f32 %v664, 0.0
    %v743 = vmax.f32 %v683, 0.0
    %v744 = vmax.f32 %v702, 0.0
    %v745 = vmax.f32 %v721, 0.0
    %v746 = vmax.f32 %v438, 0.0
    %v747 = vmax.f32 %v457, 0.0
    %v748 = vmax.f32 %v476, 0.0
    %v749 = vmax.f32 %v495, 0.0
    %v750 = vmax.f32 %v514, 0.0
    %v751 = vmax.f32 %v533, 0.0
    %v752 = vmax.f32 %v552, 0.0
    %v753 = vmax.f32 %v571, 0.0
    %v754 = vmax.f32 %v590, 0.0
    %v755 = vmax.f32 %v609, 0.0
    %v756 = vmax.f32 %v628, 0.0
    %v757 = vmax.f32 %v647, 0.0
    %v758 = vmax.f32 %v666, 0.0
    %v759 = vmax.f32 %v685, 0.0
    %v760 = vmax.f32 %v704, 0.0
    %v761 = vmax.f32 %v723, 0.0
    %v762 = vmax.f32 %v441, 0.0
    %v763 = vmax.f32 %v460, 0.0
    %v764 = vmax.f32 %v479, 0.0
    %v765 = vmax.f32 %v498, 0.0
    %v766 = vmax.f32 %v517, 0.0
    %v767 = vmax.f32 %v536, 0.0
    %v768 = vmax.f32 %v555, 0.0
    %v769 = vmax.f32 %v574, 0.0
    %v770 = vmax.f32 %v593, 0.0
    %v771 = vmax.f32 %v612, 0.0
    %v772 = vmax.f32 %v631, 0.0
    %v773 = vmax.f32 %v650, 0.0
    %v774 = vmax.f32 %v669, 0.0
    %v775 = vmax.f32 %v688, 0.0
    %v776 = vmax.f32 %v707, 0.0
    %v777 = vmax.f32 %v726, 0.0
    %v778 = vmax.f32 %v443, 0.0
    %v779 = vmax.f32 %v462, 0.0
    %v780 = vmax.f32 %v481, 0.0
    %v781 = vmax.f32 %v500, 0.0
    %v782 = vmax.f32 %v519, 0.0
    %v783 = vmax.f32 %v538, 0.0
    %v784 = vmax.f32 %v557, 0.0
    %v785 = vmax.f32 %v576, 0.0
    %v786 = vmax.f32 %v595, 0.0
    %v787 = vmax.f32 %v614, 0.0
    %v788 = vmax.f32 %v633, 0.0
    %v789 = vmax.f32 %v652, 0.0
    %v790 = vmax.f32 %v671, 0.0
    %v791 = vmax.f32 %v690, 0.0
    %v792 = vmax.f32 %v709, 0.0
    %v793 = vmax.f32 %v728, 0.0
    %v794 = vmax.f32 %v730, %v738
    %v795 = vmax.f32 %v731, %v739
    %v796 = vmax.f32 %v732, %v740
    %v797 = vmax.f32 %v733, %v741
    %v798 = vmax.f32 %v734, %v742
    %v799 = vmax.f32 %v735, %v743
    %v800 = vmax.f32 %v736, %v744
    %v801 = vmax.f32 %v737, %v745
    %v802 = vmax.f32 %v746, %v754
    %v803 = vmax.f32 %v747, %v755
    %v804 = vmax.f32 %v748, %v756
    %v805 = vmax.f32 %v749, %v757
    %v806 = vmax.f32 %v750, %v758
    %v807 = vmax.f32 %v751, %v759
    %v808 = vmax.f32 %v752, %v760
    %v809 = vmax.f32 %v753, %v761
    %v810 = vmax.f32 %v762, %v770
    %v811 = vmax.f32 %v763, %v771
    %v812 = vmax.f32 %v764, %v772
    %v813 = vmax.f32 %v765, %v773
    %v814 = vmax.f32 %v766, %v774
    %v815 = vmax.f32 %v767, %v775
    %v816 = vmax.f32 %v768, %v776
    %v817 = vmax.f32 %v769, %v777
    %v818 = vmax.f32 %v778, %v786
    %v819 = vmax.f32 %v779, %v787
    %v820 = vmax.f32 %v780, %v788
    %v821 = vmax.f32 %v781, %v789
    %v822 = vmax.f32 %v782, %v790
    %v823 = vmax.f32 %v783, %v791
    %v824 = vmax.f32 %v784, %v792
    %v825 = vmax.f32 %v785, %v793
    %v826 = vld [vmem:[%s5] sm:$0xf]
    %v827 = vld [vmem:[%s5 + $0x4] sm:$0xf]
    %v828 = vld [vmem:[%s5 + $0x8] sm:$0xf]
    %v829 = vld [vmem:[%s5 + $0xc] sm:$0xf]
    %v830 = vld [vmem:[%s5 + $0x10] sm:$0xf]
    %v831 = vld [vmem:[%s5 + $0x14] sm:$0xf]
    %v832 = vld [vmem:[%s5 + $0x18] sm:$0xf]
    %v833 = vld [vmem:[%s5 + $0x1c] sm:$0xf]
    %v834 = vpack.c.bf16 %v802, %v794
    %v835 = vpack.c.bf16 %v803, %v795
    %v836 = vpack.c.bf16 %v804, %v796
    %v837 = vpack.c.bf16 %v805, %v797
    %v838 = vpack.c.bf16 %v806, %v798
    %v839 = vpack.c.bf16 %v807, %v799
    %v840 = vpack.c.bf16 %v808, %v800
    %v841 = vpack.c.bf16 %v809, %v801
    %v842 = vpack.c.bf16 %v818, %v810
    %v843 = vpack.c.bf16 %v819, %v811
    %v844 = vpack.c.bf16 %v820, %v812
    %v845 = vpack.c.bf16 %v821, %v813
    %v846 = vpack.c.bf16 %v822, %v814
    %v847 = vpack.c.bf16 %v823, %v815
    %v848 = vpack.c.bf16 %v824, %v816
    %v849 = vpack.c.bf16 %v825, %v817
    %v850 = vld [vmem:[%s6] sm:$0xff]
    %v851 = vld [vmem:[%s6 + $0x8] sm:$0xff]
    %v852 = vld [vmem:[%s6 + $0x10] sm:$0xff]
    %v853 = vld [vmem:[%s6 + $0x18] sm:$0xff]
    %v854 = vld [vmem:[%s6 + $0x20] sm:$0xff]
    %v855 = vld [vmem:[%s6 + $0x28] sm:$0xff]
    %v856 = vld [vmem:[%s6 + $0x30] sm:$0xff]
    %v857 = vld [vmem:[%s6 + $0x38] sm:$0xff]
    %859 = vset.pattern.permute.xlu0 0
    %860 = vperm.xlu0 %859, %v850
    %v861 = vpop.permute.xlu0 %860
    %864 = vset.pattern.permute.xlu0 0
    %865 = vperm.xlu0 %864, %v851
    %v866 = vpop.permute.xlu0 %865
    %869 = vset.pattern.permute.xlu0 0
    %870 = vperm.xlu0 %869, %v852
    %v871 = vpop.permute.xlu0 %870
    %874 = vset.pattern.permute.xlu0 0
    %875 = vperm.xlu0 %874, %v853
    %v876 = vpop.permute.xlu0 %875
    %879 = vset.pattern.permute.xlu0 0
    %880 = vperm.xlu0 %879, %v854
    %v881 = vpop.permute.xlu0 %880
    %884 = vset.pattern.permute.xlu0 0
    %885 = vperm.xlu0 %884, %v855
    %v886 = vpop.permute.xlu0 %885
    %889 = vset.pattern.permute.xlu0 0
    %890 = vperm.xlu0 %889, %v856
    %v891 = vpop.permute.xlu0 %890
    %894 = vset.pattern.permute.xlu0 0
    %895 = vperm.xlu0 %894, %v857
    %v896 = vpop.permute.xlu0 %895
    %v906 = vunpack.c.l.b16 %v826
    %v907 = vunpack.c.l.b16 %v827
    %v908 = vunpack.c.l.b16 %v828
    %v909 = vunpack.c.l.b16 %v829
    %v910 = vunpack.c.l.b16 %v830
    %v911 = vunpack.c.l.b16 %v831
    %v912 = vunpack.c.l.b16 %v832
    %v913 = vunpack.c.l.b16 %v833
    %v914 = vpack.c.b16 %v907, %v906
    %v915 = vpack.c.b16 %v909, %v908
    %v916 = vpack.c.b16 %v911, %v910
    %v917 = vpack.c.b16 %v913, %v912
    %vm918 = vcmask 261120
    %v920 = vsel %vm918, %v914, 0
    %v923 = vsel %vm918, %v915, 0
    %v926 = vsel %vm918, %v916, 0
    %v929 = vsel %vm918, %v917, 0
    %931 = vmatpush.bf16.msra.mxu0 0
    %932 = vmatpush.bf16.msra.mxu0 0
    %933 = vmatpush.bf16.msra.mxu0 0
    %934 = vmatpush.bf16.msra.mxu0 0
    %935 = vmatpush.bf16.msra.mxu0 0
    %936 = vmatpush.bf16.msra.mxu0 0
    %937 = vmatpush.bf16.msra.mxu0 %v842
    %938 = vmatpush.bf16.msra.mxu0 %v834
    %939 = vmatmul.bf16.gmra.mxu0 %v920
    %v940 = vpop.f32.mrf.mxu0
    %v941 = vadd.f32 %v861, %v940
    %v942 = vpop.f32.mrf.mxu0
    %v943 = vadd.f32 %v866, %v942
    %944 = vmatmul.bf16.gmra.mxu0 %v923
    %v945 = vpop.f32.mrf.mxu0
    %v946 = vadd.f32 %v871, %v945
    %v947 = vpop.f32.mrf.mxu0
    %v948 = vadd.f32 %v876, %v947
    %949 = vmatmul.bf16.gmra.mxu0 %v926
    %v950 = vpop.f32.mrf.mxu0
    %v951 = vadd.f32 %v881, %v950
    %v952 = vpop.f32.mrf.mxu0
    %v953 = vadd.f32 %v886, %v952
    %954 = vmatmul.bf16.gmra.mxu0 %v929
    %v955 = vpop.f32.mrf.mxu0
    %v956 = vadd.f32 %v891, %v955
    %v957 = vpop.f32.mrf.mxu0
    %v958 = vadd.f32 %v896, %v957
    %959 = vdwg.mxu0
    %960 = vmatpush.bf16.msra.mxu0 0
    %961 = vmatpush.bf16.msra.mxu0 0
    %962 = vmatpush.bf16.msra.mxu0 0
    %963 = vmatpush.bf16.msra.mxu0 0
    %964 = vmatpush.bf16.msra.mxu0 0
    %965 = vmatpush.bf16.msra.mxu0 0
    %966 = vmatpush.bf16.msra.mxu0 %v843
    %967 = vmatpush.bf16.msra.mxu0 %v835
    %968 = vmatmul.bf16.gmra.mxu0 %v920
    %v969 = vpop.f32.mrf.mxu0
    %v970 = vadd.f32 %v861, %v969
    %v971 = vpop.f32.mrf.mxu0
    %v972 = vadd.f32 %v866, %v971
    %973 = vmatmul.bf16.gmra.mxu0 %v923
    %v974 = vpop.f32.mrf.mxu0
    %v975 = vadd.f32 %v871, %v974
    %v976 = vpop.f32.mrf.mxu0
    %v977 = vadd.f32 %v876, %v976
    %978 = vmatmul.bf16.gmra.mxu0 %v926
    %v979 = vpop.f32.mrf.mxu0
    %v980 = vadd.f32 %v881, %v979
    %v981 = vpop.f32.mrf.mxu0
    %v982 = vadd.f32 %v886, %v981
    %983 = vmatmul.bf16.gmra.mxu0 %v929
    %v984 = vpop.f32.mrf.mxu0
    %v985 = vadd.f32 %v891, %v984
    %v986 = vpop.f32.mrf.mxu0
    %v987 = vadd.f32 %v896, %v986
    %988 = vdwg.mxu0
    %989 = vmatpush.bf16.msra.mxu0 0
    %990 = vmatpush.bf16.msra.mxu0 0
    %991 = vmatpush.bf16.msra.mxu0 0
    %992 = vmatpush.bf16.msra.mxu0 0
    %993 = vmatpush.bf16.msra.mxu0 0
    %994 = vmatpush.bf16.msra.mxu0 0
    %995 = vmatpush.bf16.msra.mxu0 %v844
    %996 = vmatpush.bf16.msra.mxu0 %v836
    %997 = vmatmul.bf16.gmra.mxu0 %v920
    %v998 = vpop.f32.mrf.mxu0
    %v999 = vadd.f32 %v861, %v998
    %v1000 = vpop.f32.mrf.mxu0
    %v1001 = vadd.f32 %v866, %v1000
    %1002 = vmatmul.bf16.gmra.mxu0 %v923
    %v1003 = vpop.f32.mrf.mxu0
    %v1004 = vadd.f32 %v871, %v1003
    %v1005 = vpop.f32.mrf.mxu0
    %v1006 = vadd.f32 %v876, %v1005
    %1007 = vmatmul.bf16.gmra.mxu0 %v926
    %v1008 = vpop.f32.mrf.mxu0
    %v1009 = vadd.f32 %v881, %v1008
    %v1010 = vpop.f32.mrf.mxu0
    %v1011 = vadd.f32 %v886, %v1010
    %1012 = vmatmul.bf16.gmra.mxu0 %v929
    %v1013 = vpop.f32.mrf.mxu0
    %v1014 = vadd.f32 %v891, %v1013
    %v1015 = vpop.f32.mrf.mxu0
    %v1016 = vadd.f32 %v896, %v1015
    %1017 = vdwg.mxu0
    %1018 = vmatpush.bf16.msra.mxu0 0
    %1019 = vmatpush.bf16.msra.mxu0 0
    %1020 = vmatpush.bf16.msra.mxu0 0
    %1021 = vmatpush.bf16.msra.mxu0 0
    %1022 = vmatpush.bf16.msra.mxu0 0
    %1023 = vmatpush.bf16.msra.mxu0 0
    %1024 = vmatpush.bf16.msra.mxu0 %v845
    %1025 = vmatpush.bf16.msra.mxu0 %v837
    %1026 = vmatmul.bf16.gmra.mxu0 %v920
    %v1027 = vpop.f32.mrf.mxu0
    %v1028 = vadd.f32 %v861, %v1027
    %v1029 = vpop.f32.mrf.mxu0
    %v1030 = vadd.f32 %v866, %v1029
    %1031 = vmatmul.bf16.gmra.mxu0 %v923
    %v1032 = vpop.f32.mrf.mxu0
    %v1033 = vadd.f32 %v871, %v1032
    %v1034 = vpop.f32.mrf.mxu0
    %v1035 = vadd.f32 %v876, %v1034
    %1036 = vmatmul.bf16.gmra.mxu0 %v926
    %v1037 = vpop.f32.mrf.mxu0
    %v1038 = vadd.f32 %v881, %v1037
    %v1039 = vpop.f32.mrf.mxu0
    %v1040 = vadd.f32 %v886, %v1039
    %1041 = vmatmul.bf16.gmra.mxu0 %v929
    %v1042 = vpop.f32.mrf.mxu0
    %v1043 = vadd.f32 %v891, %v1042
    %v1044 = vpop.f32.mrf.mxu0
    %v1045 = vadd.f32 %v896, %v1044
    %1046 = vdwg.mxu0
    %1047 = vmatpush.bf16.msra.mxu0 0
    %1048 = vmatpush.bf16.msra.mxu0 0
    %1049 = vmatpush.bf16.msra.mxu0 0
    %1050 = vmatpush.bf16.msra.mxu0 0
    %1051 = vmatpush.bf16.msra.mxu0 0
    %1052 = vmatpush.bf16.msra.mxu0 0
    %1053 = vmatpush.bf16.msra.mxu0 %v846
    %1054 = vmatpush.bf16.msra.mxu0 %v838
    %1055 = vmatmul.bf16.gmra.mxu0 %v920
    %v1056 = vpop.f32.mrf.mxu0
    %v1057 = vadd.f32 %v861, %v1056
    %v1058 = vpop.f32.mrf.mxu0
    %v1059 = vadd.f32 %v866, %v1058
    %1060 = vmatmul.bf16.gmra.mxu0 %v923
    %v1061 = vpop.f32.mrf.mxu0
    %v1062 = vadd.f32 %v871, %v1061
    %v1063 = vpop.f32.mrf.mxu0
    %v1064 = vadd.f32 %v876, %v1063
    %1065 = vmatmul.bf16.gmra.mxu0 %v926
    %v1066 = vpop.f32.mrf.mxu0
    %v1067 = vadd.f32 %v881, %v1066
    %v1068 = vpop.f32.mrf.mxu0
    %v1069 = vadd.f32 %v886, %v1068
    %1070 = vmatmul.bf16.gmra.mxu0 %v929
    %v1071 = vpop.f32.mrf.mxu0
    %v1072 = vadd.f32 %v891, %v1071
    %v1073 = vpop.f32.mrf.mxu0
    %v1074 = vadd.f32 %v896, %v1073
    %1075 = vdwg.mxu0
    %1076 = vmatpush.bf16.msra.mxu0 0
    %1077 = vmatpush.bf16.msra.mxu0 0
    %1078 = vmatpush.bf16.msra.mxu0 0
    %1079 = vmatpush.bf16.msra.mxu0 0
    %1080 = vmatpush.bf16.msra.mxu0 0
    %1081 = vmatpush.bf16.msra.mxu0 0
    %1082 = vmatpush.bf16.msra.mxu0 %v847
    %1083 = vmatpush.bf16.msra.mxu0 %v839
    %1084 = vmatmul.bf16.gmra.mxu0 %v920
    %v1085 = vpop.f32.mrf.mxu0
    %v1086 = vadd.f32 %v861, %v1085
    %v1087 = vpop.f32.mrf.mxu0
    %v1088 = vadd.f32 %v866, %v1087
    %1089 = vmatmul.bf16.gmra.mxu0 %v923
    %v1090 = vpop.f32.mrf.mxu0
    %v1091 = vadd.f32 %v871, %v1090
    %v1092 = vpop.f32.mrf.mxu0
    %v1093 = vadd.f32 %v876, %v1092
    %1094 = vmatmul.bf16.gmra.mxu0 %v926
    %v1095 = vpop.f32.mrf.mxu0
    %v1096 = vadd.f32 %v881, %v1095
    %v1097 = vpop.f32.mrf.mxu0
    %v1098 = vadd.f32 %v886, %v1097
    %1099 = vmatmul.bf16.gmra.mxu0 %v929
    %v1100 = vpop.f32.mrf.mxu0
    %v1101 = vadd.f32 %v891, %v1100
    %v1102 = vpop.f32.mrf.mxu0
    %v1103 = vadd.f32 %v896, %v1102
    %1104 = vdwg.mxu0
    %1105 = vmatpush.bf16.msra.mxu0 0
    %1106 = vmatpush.bf16.msra.mxu0 0
    %1107 = vmatpush.bf16.msra.mxu0 0
    %1108 = vmatpush.bf16.msra.mxu0 0
    %1109 = vmatpush.bf16.msra.mxu0 0
    %1110 = vmatpush.bf16.msra.mxu0 0
    %1111 = vmatpush.bf16.msra.mxu0 %v848
    %1112 = vmatpush.bf16.msra.mxu0 %v840
    %1113 = vmatmul.bf16.gmra.mxu0 %v920
    %v1114 = vpop.f32.mrf.mxu0
    %v1115 = vadd.f32 %v861, %v1114
    %v1116 = vpop.f32.mrf.mxu0
    %v1117 = vadd.f32 %v866, %v1116
    %1118 = vmatmul.bf16.gmra.mxu0 %v923
    %v1119 = vpop.f32.mrf.mxu0
    %v1120 = vadd.f32 %v871, %v1119
    %v1121 = vpop.f32.mrf.mxu0
    %v1122 = vadd.f32 %v876, %v1121
    %1123 = vmatmul.bf16.gmra.mxu0 %v926
    %v1124 = vpop.f32.mrf.mxu0
    %v1125 = vadd.f32 %v881, %v1124
    %v1126 = vpop.f32.mrf.mxu0
    %v1127 = vadd.f32 %v886, %v1126
    %1128 = vmatmul.bf16.gmra.mxu0 %v929
    %v1129 = vpop.f32.mrf.mxu0
    %v1130 = vadd.f32 %v891, %v1129
    %v1131 = vpop.f32.mrf.mxu0
    %v1132 = vadd.f32 %v896, %v1131
    %1133 = vdwg.mxu0
    %1134 = vmatpush.bf16.msra.mxu0 0
    %1135 = vmatpush.bf16.msra.mxu0 0
    %1136 = vmatpush.bf16.msra.mxu0 0
    %1137 = vmatpush.bf16.msra.mxu0 0
    %1138 = vmatpush.bf16.msra.mxu0 0
    %1139 = vmatpush.bf16.msra.mxu0 0
    %1140 = vmatpush.bf16.msra.mxu0 %v849
    %1141 = vmatpush.bf16.msra.mxu0 %v841
    %1142 = vmatmul.bf16.gmra.mxu0 %v920
    %v1143 = vpop.f32.mrf.mxu0
    %v1144 = vadd.f32 %v861, %v1143
    %v1145 = vpop.f32.mrf.mxu0
    %v1146 = vadd.f32 %v866, %v1145
    %1147 = vmatmul.bf16.gmra.mxu0 %v923
    %v1148 = vpop.f32.mrf.mxu0
    %v1149 = vadd.f32 %v871, %v1148
    %v1150 = vpop.f32.mrf.mxu0
    %v1151 = vadd.f32 %v876, %v1150
    %1152 = vmatmul.bf16.gmra.mxu0 %v926
    %v1153 = vpop.f32.mrf.mxu0
    %v1154 = vadd.f32 %v881, %v1153
    %v1155 = vpop.f32.mrf.mxu0
    %v1156 = vadd.f32 %v886, %v1155
    %1157 = vmatmul.bf16.gmra.mxu0 %v929
    %v1158 = vpop.f32.mrf.mxu0
    %v1159 = vadd.f32 %v891, %v1158
    %v1160 = vpop.f32.mrf.mxu0
    %v1161 = vadd.f32 %v896, %v1160
    %1162 = vdwg.mxu0
    %v1163 = vmax.f32 %v941, 0.0
    %v1164 = vmax.f32 %v970, 0.0
    %v1165 = vmax.f32 %v999, 0.0
    %v1166 = vmax.f32 %v1028, 0.0
    %v1167 = vmax.f32 %v1057, 0.0
    %v1168 = vmax.f32 %v1086, 0.0
    %v1169 = vmax.f32 %v1115, 0.0
    %v1170 = vmax.f32 %v1144, 0.0
    %v1171 = vmax.f32 %v943, 0.0
    %v1172 = vmax.f32 %v972, 0.0
    %v1173 = vmax.f32 %v1001, 0.0
    %v1174 = vmax.f32 %v1030, 0.0
    %v1175 = vmax.f32 %v1059, 0.0
    %v1176 = vmax.f32 %v1088, 0.0
    %v1177 = vmax.f32 %v1117, 0.0
    %v1178 = vmax.f32 %v1146, 0.0
    %v1179 = vmax.f32 %v946, 0.0
    %v1180 = vmax.f32 %v975, 0.0
    %v1181 = vmax.f32 %v1004, 0.0
    %v1182 = vmax.f32 %v1033, 0.0
    %v1183 = vmax.f32 %v1062, 0.0
    %v1184 = vmax.f32 %v1091, 0.0
    %v1185 = vmax.f32 %v1120, 0.0
    %v1186 = vmax.f32 %v1149, 0.0
    %v1187 = vmax.f32 %v948, 0.0
    %v1188 = vmax.f32 %v977, 0.0
    %v1189 = vmax.f32 %v1006, 0.0
    %v1190 = vmax.f32 %v1035, 0.0
    %v1191 = vmax.f32 %v1064, 0.0
    %v1192 = vmax.f32 %v1093, 0.0
    %v1193 = vmax.f32 %v1122, 0.0
    %v1194 = vmax.f32 %v1151, 0.0
    %v1195 = vmax.f32 %v951, 0.0
    %v1196 = vmax.f32 %v980, 0.0
    %v1197 = vmax.f32 %v1009, 0.0
    %v1198 = vmax.f32 %v1038, 0.0
    %v1199 = vmax.f32 %v1067, 0.0
    %v1200 = vmax.f32 %v1096, 0.0
    %v1201 = vmax.f32 %v1125, 0.0
    %v1202 = vmax.f32 %v1154, 0.0
    %v1203 = vmax.f32 %v953, 0.0
    %v1204 = vmax.f32 %v982, 0.0
    %v1205 = vmax.f32 %v1011, 0.0
    %v1206 = vmax.f32 %v1040, 0.0
    %v1207 = vmax.f32 %v1069, 0.0
    %v1208 = vmax.f32 %v1098, 0.0
    %v1209 = vmax.f32 %v1127, 0.0
    %v1210 = vmax.f32 %v1156, 0.0
    %v1211 = vmax.f32 %v956, 0.0
    %v1212 = vmax.f32 %v985, 0.0
    %v1213 = vmax.f32 %v1014, 0.0
    %v1214 = vmax.f32 %v1043, 0.0
    %v1215 = vmax.f32 %v1072, 0.0
    %v1216 = vmax.f32 %v1101, 0.0
    %v1217 = vmax.f32 %v1130, 0.0
    %v1218 = vmax.f32 %v1159, 0.0
    %v1219 = vmax.f32 %v958, 0.0
    %v1220 = vmax.f32 %v987, 0.0
    %v1221 = vmax.f32 %v1016, 0.0
    %v1222 = vmax.f32 %v1045, 0.0
    %v1223 = vmax.f32 %v1074, 0.0
    %v1224 = vmax.f32 %v1103, 0.0
    %v1225 = vmax.f32 %v1132, 0.0
    %v1226 = vmax.f32 %v1161, 0.0
    %v1227 = vmax.f32 %v1163, %v1167
    %v1228 = vmax.f32 %v1164, %v1168
    %v1229 = vmax.f32 %v1165, %v1169
    %v1230 = vmax.f32 %v1166, %v1170
    %v1231 = vmax.f32 %v1171, %v1175
    %v1232 = vmax.f32 %v1172, %v1176
    %v1233 = vmax.f32 %v1173, %v1177
    %v1234 = vmax.f32 %v1174, %v1178
    %v1235 = vmax.f32 %v1179, %v1183
    %v1236 = vmax.f32 %v1180, %v1184
    %v1237 = vmax.f32 %v1181, %v1185
    %v1238 = vmax.f32 %v1182, %v1186
    %v1239 = vmax.f32 %v1187, %v1191
    %v1240 = vmax.f32 %v1188, %v1192
    %v1241 = vmax.f32 %v1189, %v1193
    %v1242 = vmax.f32 %v1190, %v1194
    %v1243 = vmax.f32 %v1195, %v1199
    %v1244 = vmax.f32 %v1196, %v1200
    %v1245 = vmax.f32 %v1197, %v1201
    %v1246 = vmax.f32 %v1198, %v1202
    %v1247 = vmax.f32 %v1203, %v1207
    %v1248 = vmax.f32 %v1204, %v1208
    %v1249 = vmax.f32 %v1205, %v1209
    %v1250 = vmax.f32 %v1206, %v1210
    %v1251 = vmax.f32 %v1211, %v1215
    %v1252 = vmax.f32 %v1212, %v1216
    %v1253 = vmax.f32 %v1213, %v1217
    %v1254 = vmax.f32 %v1214, %v1218
    %v1255 = vmax.f32 %v1219, %v1223
    %v1256 = vmax.f32 %v1220, %v1224
    %v1257 = vmax.f32 %v1221, %v1225
    %v1258 = vmax.f32 %v1222, %v1226
    %v1259 = vld [vmem:[%s7] sm:$0xf]
    %v1260 = vld [vmem:[%s7 + $0x4] sm:$0xf]
    %v1261 = vld [vmem:[%s7 + $0x8] sm:$0xf]
    %v1262 = vld [vmem:[%s7 + $0xc] sm:$0xf]
    %v1263 = vld [vmem:[%s7 + $0x10] sm:$0xf]
    %v1264 = vld [vmem:[%s7 + $0x14] sm:$0xf]
    %v1265 = vld [vmem:[%s7 + $0x18] sm:$0xf]
    %v1266 = vld [vmem:[%s7 + $0x1c] sm:$0xf]
    %v1267 = vld [vmem:[%s7 + $0x20] sm:$0xf]
    %v1268 = vld [vmem:[%s7 + $0x24] sm:$0xf]
    %v1269 = vld [vmem:[%s7 + $0x28] sm:$0xf]
    %v1270 = vld [vmem:[%s7 + $0x2c] sm:$0xf]
    %v1271 = vld [vmem:[%s7 + $0x30] sm:$0xf]
    %v1272 = vld [vmem:[%s7 + $0x34] sm:$0xf]
    %v1273 = vld [vmem:[%s7 + $0x38] sm:$0xf]
    %v1274 = vld [vmem:[%s7 + $0x3c] sm:$0xf]
    %v1275 = vpack.c.bf16 %v1231, %v1227
    %v1276 = vpack.c.bf16 %v1232, %v1228
    %v1277 = vpack.c.bf16 %v1233, %v1229
    %v1278 = vpack.c.bf16 %v1234, %v1230
    %v1279 = vpack.c.bf16 %v1239, %v1235
    %v1280 = vpack.c.bf16 %v1240, %v1236
    %v1281 = vpack.c.bf16 %v1241, %v1237
    %v1282 = vpack.c.bf16 %v1242, %v1238
    %v1283 = vpack.c.bf16 %v1247, %v1243
    %v1284 = vpack.c.bf16 %v1248, %v1244
    %v1285 = vpack.c.bf16 %v1249, %v1245
    %v1286 = vpack.c.bf16 %v1250, %v1246
    %v1287 = vpack.c.bf16 %v1255, %v1251
    %v1288 = vpack.c.bf16 %v1256, %v1252
    %v1289 = vpack.c.bf16 %v1257, %v1253
    %v1290 = vpack.c.bf16 %v1258, %v1254
    %v1291 = vld [vmem:[%s8] sm:$0xff]
    %v1292 = vld [vmem:[%s8 + $0x8] sm:$0xff]
    %v1293 = vld [vmem:[%s8 + $0x10] sm:$0xff]
    %v1294 = vld [vmem:[%s8 + $0x18] sm:$0xff]
    %v1295 = vld [vmem:[%s8 + $0x20] sm:$0xff]
    %v1296 = vld [vmem:[%s8 + $0x28] sm:$0xff]
    %v1297 = vld [vmem:[%s8 + $0x30] sm:$0xff]
    %v1298 = vld [vmem:[%s8 + $0x38] sm:$0xff]
    %v1299 = vld [vmem:[%s8 + $0x40] sm:$0xff]
    %v1300 = vld [vmem:[%s8 + $0x48] sm:$0xff]
    %v1301 = vld [vmem:[%s8 + $0x50] sm:$0xff]
    %v1302 = vld [vmem:[%s8 + $0x58] sm:$0xff]
    %v1303 = vld [vmem:[%s8 + $0x60] sm:$0xff]
    %v1304 = vld [vmem:[%s8 + $0x68] sm:$0xff]
    %v1305 = vld [vmem:[%s8 + $0x70] sm:$0xff]
    %v1306 = vld [vmem:[%s8 + $0x78] sm:$0xff]
    %1308 = vset.pattern.permute.xlu0 0
    %1309 = vperm.xlu0 %1308, %v1291
    %v1310 = vpop.permute.xlu0 %1309
    %1313 = vset.pattern.permute.xlu0 0
    %1314 = vperm.xlu0 %1313, %v1292
    %v1315 = vpop.permute.xlu0 %1314
    %1318 = vset.pattern.permute.xlu0 0
    %1319 = vperm.xlu0 %1318, %v1293
    %v1320 = vpop.permute.xlu0 %1319
    %1323 = vset.pattern.permute.xlu0 0
    %1324 = vperm.xlu0 %1323, %v1294
    %v1325 = vpop.permute.xlu0 %1324
    %1328 = vset.pattern.permute.xlu0 0
    %1329 = vperm.xlu0 %1328, %v1295
    %v1330 = vpop.permute.xlu0 %1329
    %1333 = vset.pattern.permute.xlu0 0
    %1334 = vperm.xlu0 %1333, %v1296
    %v1335 = vpop.permute.xlu0 %1334
    %1338 = vset.pattern.permute.xlu0 0
    %1339 = vperm.xlu0 %1338, %v1297
    %v1340 = vpop.permute.xlu0 %1339
    %1343 = vset.pattern.permute.xlu0 0
    %1344 = vperm.xlu0 %1343, %v1298
    %v1345 = vpop.permute.xlu0 %1344
    %1348 = vset.pattern.permute.xlu0 0
    %1349 = vperm.xlu0 %1348, %v1299
    %v1350 = vpop.permute.xlu0 %1349
    %1353 = vset.pattern.permute.xlu0 0
    %1354 = vperm.xlu0 %1353, %v1300
    %v1355 = vpop.permute.xlu0 %1354
    %1358 = vset.pattern.permute.xlu0 0
    %1359 = vperm.xlu0 %1358, %v1301
    %v1360 = vpop.permute.xlu0 %1359
    %1363 = vset.pattern.permute.xlu0 0
    %1364 = vperm.xlu0 %1363, %v1302
    %v1365 = vpop.permute.xlu0 %1364
    %1368 = vset.pattern.permute.xlu0 0
    %1369 = vperm.xlu0 %1368, %v1303
    %v1370 = vpop.permute.xlu0 %1369
    %1373 = vset.pattern.permute.xlu0 0
    %1374 = vperm.xlu0 %1373, %v1304
    %v1375 = vpop.permute.xlu0 %1374
    %1378 = vset.pattern.permute.xlu0 0
    %1379 = vperm.xlu0 %1378, %v1305
    %v1380 = vpop.permute.xlu0 %1379
    %1383 = vset.pattern.permute.xlu0 0
    %1384 = vperm.xlu0 %1383, %v1306
    %v1385 = vpop.permute.xlu0 %1384
    %v1403 = vunpack.c.l.b16 %v1259
    %v1404 = vunpack.c.l.b16 %v1260
    %v1405 = vunpack.c.l.b16 %v1261
    %v1406 = vunpack.c.l.b16 %v1262
    %v1407 = vunpack.c.l.b16 %v1263
    %v1408 = vunpack.c.l.b16 %v1264
    %v1409 = vunpack.c.l.b16 %v1265
    %v1410 = vunpack.c.l.b16 %v1266
    %v1411 = vunpack.c.l.b16 %v1267
    %v1412 = vunpack.c.l.b16 %v1268
    %v1413 = vunpack.c.l.b16 %v1269
    %v1414 = vunpack.c.l.b16 %v1270
    %v1415 = vunpack.c.l.b16 %v1271
    %v1416 = vunpack.c.l.b16 %v1272
    %v1417 = vunpack.c.l.b16 %v1273
    %v1418 = vunpack.c.l.b16 %v1274
    %v1419 = vpack.c.b16 %v1404, %v1403
    %v1420 = vpack.c.b16 %v1406, %v1405
    %v1421 = vpack.c.b16 %v1408, %v1407
    %v1422 = vpack.c.b16 %v1410, %v1409
    %v1423 = vpack.c.b16 %v1412, %v1411
    %v1424 = vpack.c.b16 %v1414, %v1413
    %v1425 = vpack.c.b16 %v1416, %v1415
    %v1426 = vpack.c.b16 %v1418, %v1417
    %vm1427 = vcmask 523264
    %v1429 = vsel %vm1427, %v1419, 0
    %v1432 = vsel %vm1427, %v1420, 0
    %v1435 = vsel %vm1427, %v1421, 0
    %v1438 = vsel %vm1427, %v1422, 0
    %v1441 = vsel %vm1427, %v1423, 0
    %v1444 = vsel %vm1427, %v1424, 0
    %v1447 = vsel %vm1427, %v1425, 0
    %v1450 = vsel %vm1427, %v1426, 0
    %1452 = vmatpush.bf16.msra.mxu0 0
    %1453 = vmatpush.bf16.msra.mxu0 0
    %1454 = vmatpush.bf16.msra.mxu0 0
    %1455 = vmatpush.bf16.msra.mxu0 0
    %1456 = vmatpush.bf16.msra.mxu0 %v1287
    %1457 = vmatpush.bf16.msra.mxu0 %v1283
    %1458 = vmatpush.bf16.msra.mxu0 %v1279
    %1459 = vmatpush.bf16.msra.mxu0 %v1275
    %1460 = vmatmul.bf16.gmra.mxu0 %v1429
    %v1461 = vpop.f32.mrf.mxu0
    %v1462 = vadd.f32 %v1310, %v1461
    %v1463 = vpop.f32.mrf.mxu0
    %v1464 = vadd.f32 %v1315, %v1463
    %1465 = vmatmul.bf16.gmra.mxu0 %v1432
    %v1466 = vpop.f32.mrf.mxu0
    %v1467 = vadd.f32 %v1320, %v1466
    %v1468 = vpop.f32.mrf.mxu0
    %v1469 = vadd.f32 %v1325, %v1468
    %1470 = vmatmul.bf16.gmra.mxu0 %v1435
    %v1471 = vpop.f32.mrf.mxu0
    %v1472 = vadd.f32 %v1330, %v1471
    %v1473 = vpop.f32.mrf.mxu0
    %v1474 = vadd.f32 %v1335, %v1473
    %1475 = vmatmul.bf16.gmra.mxu0 %v1438
    %v1476 = vpop.f32.mrf.mxu0
    %v1477 = vadd.f32 %v1340, %v1476
    %v1478 = vpop.f32.mrf.mxu0
    %v1479 = vadd.f32 %v1345, %v1478
    %1480 = vmatmul.bf16.gmra.mxu0 %v1441
    %v1481 = vpop.f32.mrf.mxu0
    %v1482 = vadd.f32 %v1350, %v1481
    %v1483 = vpop.f32.mrf.mxu0
    %v1484 = vadd.f32 %v1355, %v1483
    %1485 = vmatmul.bf16.gmra.mxu0 %v1444
    %v1486 = vpop.f32.mrf.mxu0
    %v1487 = vadd.f32 %v1360, %v1486
    %v1488 = vpop.f32.mrf.mxu0
    %v1489 = vadd.f32 %v1365, %v1488
    %1490 = vmatmul.bf16.gmra.mxu0 %v1447
    %v1491 = vpop.f32.mrf.mxu0
    %v1492 = vadd.f32 %v1370, %v1491
    %v1493 = vpop.f32.mrf.mxu0
    %v1494 = vadd.f32 %v1375, %v1493
    %1495 = vmatmul.bf16.gmra.mxu0 %v1450
    %v1496 = vpop.f32.mrf.mxu0
    %v1497 = vadd.f32 %v1380, %v1496
    %v1498 = vpop.f32.mrf.mxu0
    %v1499 = vadd.f32 %v1385, %v1498
    %1500 = vdwg.mxu0
    %1501 = vmatpush.bf16.msra.mxu0 0
    %1502 = vmatpush.bf16.msra.mxu0 0
    %1503 = vmatpush.bf16.msra.mxu0 0
    %1504 = vmatpush.bf16.msra.mxu0 0
    %1505 = vmatpush.bf16.msra.mxu0 %v1288
    %1506 = vmatpush.bf16.msra.mxu0 %v1284
    %1507 = vmatpush.bf16.msra.mxu0 %v1280
    %1508 = vmatpush.bf16.msra.mxu0 %v1276
    %1509 = vmatmul.bf16.gmra.mxu0 %v1429
    %v1510 = vpop.f32.mrf.mxu0
    %v1511 = vadd.f32 %v1310, %v1510
    %v1512 = vpop.f32.mrf.mxu0
    %v1513 = vadd.f32 %v1315, %v1512
    %1514 = vmatmul.bf16.gmra.mxu0 %v1432
    %v1515 = vpop.f32.mrf.mxu0
    %v1516 = vadd.f32 %v1320, %v1515
    %v1517 = vpop.f32.mrf.mxu0
    %v1518 = vadd.f32 %v1325, %v1517
    %1519 = vmatmul.bf16.gmra.mxu0 %v1435
    %v1520 = vpop.f32.mrf.mxu0
    %v1521 = vadd.f32 %v1330, %v1520
    %v1522 = vpop.f32.mrf.mxu0
    %v1523 = vadd.f32 %v1335, %v1522
    %1524 = vmatmul.bf16.gmra.mxu0 %v1438
    %v1525 = vpop.f32.mrf.mxu0
    %v1526 = vadd.f32 %v1340, %v1525
    %v1527 = vpop.f32.mrf.mxu0
    %v1528 = vadd.f32 %v1345, %v1527
    %1529 = vmatmul.bf16.gmra.mxu0 %v1441
    %v1530 = vpop.f32.mrf.mxu0
    %v1531 = vadd.f32 %v1350, %v1530
    %v1532 = vpop.f32.mrf.mxu0
    %v1533 = vadd.f32 %v1355, %v1532
    %1534 = vmatmul.bf16.gmra.mxu0 %v1444
    %v1535 = vpop.f32.mrf.mxu0
    %v1536 = vadd.f32 %v1360, %v1535
    %v1537 = vpop.f32.mrf.mxu0
    %v1538 = vadd.f32 %v1365, %v1537
    %1539 = vmatmul.bf16.gmra.mxu0 %v1447
    %v1540 = vpop.f32.mrf.mxu0
    %v1541 = vadd.f32 %v1370, %v1540
    %v1542 = vpop.f32.mrf.mxu0
    %v1543 = vadd.f32 %v1375, %v1542
    %1544 = vmatmul.bf16.gmra.mxu0 %v1450
    %v1545 = vpop.f32.mrf.mxu0
    %v1546 = vadd.f32 %v1380, %v1545
    %v1547 = vpop.f32.mrf.mxu0
    %v1548 = vadd.f32 %v1385, %v1547
    %1549 = vdwg.mxu0
    %1550 = vmatpush.bf16.msra.mxu0 0
    %1551 = vmatpush.bf16.msra.mxu0 0
    %1552 = vmatpush.bf16.msra.mxu0 0
    %1553 = vmatpush.bf16.msra.mxu0 0
    %1554 = vmatpush.bf16.msra.mxu0 %v1289
    %1555 = vmatpush.bf16.msra.mxu0 %v1285
    %1556 = vmatpush.bf16.msra.mxu0 %v1281
    %1557 = vmatpush.bf16.msra.mxu0 %v1277
    %1558 = vmatmul.bf16.gmra.mxu0 %v1429
    %v1559 = vpop.f32.mrf.mxu0
    %v1560 = vadd.f32 %v1310, %v1559
    %v1561 = vpop.f32.mrf.mxu0
    %v1562 = vadd.f32 %v1315, %v1561
    %1563 = vmatmul.bf16.gmra.mxu0 %v1432
    %v1564 = vpop.f32.mrf.mxu0
    %v1565 = vadd.f32 %v1320, %v1564
    %v1566 = vpop.f32.mrf.mxu0
    %v1567 = vadd.f32 %v1325, %v1566
    %1568 = vmatmul.bf16.gmra.mxu0 %v1435
    %v1569 = vpop.f32.mrf.mxu0
    %v1570 = vadd.f32 %v1330, %v1569
    %v1571 = vpop.f32.mrf.mxu0
    %v1572 = vadd.f32 %v1335, %v1571
    %1573 = vmatmul.bf16.gmra.mxu0 %v1438
    %v1574 = vpop.f32.mrf.mxu0
    %v1575 = vadd.f32 %v1340, %v1574
    %v1576 = vpop.f32.mrf.mxu0
    %v1577 = vadd.f32 %v1345, %v1576
    %1578 = vmatmul.bf16.gmra.mxu0 %v1441
    %v1579 = vpop.f32.mrf.mxu0
    %v1580 = vadd.f32 %v1350, %v1579
    %v1581 = vpop.f32.mrf.mxu0
    %v1582 = vadd.f32 %v1355, %v1581
    %1583 = vmatmul.bf16.gmra.mxu0 %v1444
    %v1584 = vpop.f32.mrf.mxu0
    %v1585 = vadd.f32 %v1360, %v1584
    %v1586 = vpop.f32.mrf.mxu0
    %v1587 = vadd.f32 %v1365, %v1586
    %1588 = vmatmul.bf16.gmra.mxu0 %v1447
    %v1589 = vpop.f32.mrf.mxu0
    %v1590 = vadd.f32 %v1370, %v1589
    %v1591 = vpop.f32.mrf.mxu0
    %v1592 = vadd.f32 %v1375, %v1591
    %1593 = vmatmul.bf16.gmra.mxu0 %v1450
    %v1594 = vpop.f32.mrf.mxu0
    %v1595 = vadd.f32 %v1380, %v1594
    %v1596 = vpop.f32.mrf.mxu0
    %v1597 = vadd.f32 %v1385, %v1596
    %1598 = vdwg.mxu0
    %1599 = vmatpush.bf16.msra.mxu0 0
    %1600 = vmatpush.bf16.msra.mxu0 0
    %1601 = vmatpush.bf16.msra.mxu0 0
    %1602 = vmatpush.bf16.msra.mxu0 0
    %1603 = vmatpush.bf16.msra.mxu0 %v1290
    %1604 = vmatpush.bf16.msra.mxu0 %v1286
    %1605 = vmatpush.bf16.msra.mxu0 %v1282
    %1606 = vmatpush.bf16.msra.mxu0 %v1278
    %1607 = vmatmul.bf16.gmra.mxu0 %v1429
    %v1608 = vpop.f32.mrf.mxu0
    %v1609 = vadd.f32 %v1310, %v1608
    %v1610 = vpop.f32.mrf.mxu0
    %v1611 = vadd.f32 %v1315, %v1610
    %1612 = vmatmul.bf16.gmra.mxu0 %v1432
    %v1613 = vpop.f32.mrf.mxu0
    %v1614 = vadd.f32 %v1320, %v1613
    %v1615 = vpop.f32.mrf.mxu0
    %v1616 = vadd.f32 %v1325, %v1615
    %1617 = vmatmul.bf16.gmra.mxu0 %v1435
    %v1618 = vpop.f32.mrf.mxu0
    %v1619 = vadd.f32 %v1330, %v1618
    %v1620 = vpop.f32.mrf.mxu0
    %v1621 = vadd.f32 %v1335, %v1620
    %1622 = vmatmul.bf16.gmra.mxu0 %v1438
    %v1623 = vpop.f32.mrf.mxu0
    %v1624 = vadd.f32 %v1340, %v1623
    %v1625 = vpop.f32.mrf.mxu0
    %v1626 = vadd.f32 %v1345, %v1625
    %1627 = vmatmul.bf16.gmra.mxu0 %v1441
    %v1628 = vpop.f32.mrf.mxu0
    %v1629 = vadd.f32 %v1350, %v1628
    %v1630 = vpop.f32.mrf.mxu0
    %v1631 = vadd.f32 %v1355, %v1630
    %1632 = vmatmul.bf16.gmra.mxu0 %v1444
    %v1633 = vpop.f32.mrf.mxu0
    %v1634 = vadd.f32 %v1360, %v1633
    %v1635 = vpop.f32.mrf.mxu0
    %v1636 = vadd.f32 %v1365, %v1635
    %1637 = vmatmul.bf16.gmra.mxu0 %v1447
    %v1638 = vpop.f32.mrf.mxu0
    %v1639 = vadd.f32 %v1370, %v1638
    %v1640 = vpop.f32.mrf.mxu0
    %v1641 = vadd.f32 %v1375, %v1640
    %1642 = vmatmul.bf16.gmra.mxu0 %v1450
    %v1643 = vpop.f32.mrf.mxu0
    %v1644 = vadd.f32 %v1380, %v1643
    %v1645 = vpop.f32.mrf.mxu0
    %v1646 = vadd.f32 %v1385, %v1645
    %1647 = vdwg.mxu0
    %v1648 = vmax.f32 %v1462, 0.0
    %v1649 = vmax.f32 %v1511, 0.0
    %v1650 = vmax.f32 %v1560, 0.0
    %v1651 = vmax.f32 %v1609, 0.0
    %v1652 = vmax.f32 %v1464, 0.0
    %v1653 = vmax.f32 %v1513, 0.0
    %v1654 = vmax.f32 %v1562, 0.0
    %v1655 = vmax.f32 %v1611, 0.0
    %v1656 = vmax.f32 %v1467, 0.0
    %v1657 = vmax.f32 %v1516, 0.0
    %v1658 = vmax.f32 %v1565, 0.0
    %v1659 = vmax.f32 %v1614, 0.0
    %v1660 = vmax.f32 %v1469, 0.0
    %v1661 = vmax.f32 %v1518, 0.0
    %v1662 = vmax.f32 %v1567, 0.0
    %v1663 = vmax.f32 %v1616, 0.0
    %v1664 = vmax.f32 %v1472, 0.0
    %v1665 = vmax.f32 %v1521, 0.0
    %v1666 = vmax.f32 %v1570, 0.0
    %v1667 = vmax.f32 %v1619, 0.0
    %v1668 = vmax.f32 %v1474, 0.0
    %v1669 = vmax.f32 %v1523, 0.0
    %v1670 = vmax.f32 %v1572, 0.0
    %v1671 = vmax.f32 %v1621, 0.0
    %v1672 = vmax.f32 %v1477, 0.0
    %v1673 = vmax.f32 %v1526, 0.0
    %v1674 = vmax.f32 %v1575, 0.0
    %v1675 = vmax.f32 %v1624, 0.0
    %v1676 = vmax.f32 %v1479, 0.0
    %v1677 = vmax.f32 %v1528, 0.0
    %v1678 = vmax.f32 %v1577, 0.0
    %v1679 = vmax.f32 %v1626, 0.0
    %v1680 = vmax.f32 %v1482, 0.0
    %v1681 = vmax.f32 %v1531, 0.0
    %v1682 = vmax.f32 %v1580, 0.0
    %v1683 = vmax.f32 %v1629, 0.0
    %v1684 = vmax.f32 %v1484, 0.0
    %v1685 = vmax.f32 %v1533, 0.0
    %v1686 = vmax.f32 %v1582, 0.0
    %v1687 = vmax.f32 %v1631, 0.0
    %v1688 = vmax.f32 %v1487, 0.0
    %v1689 = vmax.f32 %v1536, 0.0
    %v1690 = vmax.f32 %v1585, 0.0
    %v1691 = vmax.f32 %v1634, 0.0
    %v1692 = vmax.f32 %v1489, 0.0
    %v1693 = vmax.f32 %v1538, 0.0
    %v1694 = vmax.f32 %v1587, 0.0
    %v1695 = vmax.f32 %v1636, 0.0
    %v1696 = vmax.f32 %v1492, 0.0
    %v1697 = vmax.f32 %v1541, 0.0
    %v1698 = vmax.f32 %v1590, 0.0
    %v1699 = vmax.f32 %v1639, 0.0
    %v1700 = vmax.f32 %v1494, 0.0
    %v1701 = vmax.f32 %v1543, 0.0
    %v1702 = vmax.f32 %v1592, 0.0
    %v1703 = vmax.f32 %v1641, 0.0
    %v1704 = vmax.f32 %v1497, 0.0
    %v1705 = vmax.f32 %v1546, 0.0
    %v1706 = vmax.f32 %v1595, 0.0
    %v1707 = vmax.f32 %v1644, 0.0
    %v1708 = vmax.f32 %v1499, 0.0
    %v1709 = vmax.f32 %v1548, 0.0
    %v1710 = vmax.f32 %v1597, 0.0
    %v1711 = vmax.f32 %v1646, 0.0
    %v1712 = vmax.f32 %v1648, %v1650
    %v1713 = vmax.f32 %v1649, %v1651
    %v1714 = vmax.f32 %v1652, %v1654
    %v1715 = vmax.f32 %v1653, %v1655
    %v1716 = vmax.f32 %v1656, %v1658
    %v1717 = vmax.f32 %v1657, %v1659
    %v1718 = vmax.f32 %v1660, %v1662
    %v1719 = vmax.f32 %v1661, %v1663
    %v1720 = vmax.f32 %v1664, %v1666
    %v1721 = vmax.f32 %v1665, %v1667
    %v1722 = vmax.f32 %v1668, %v1670
    %v1723 = vmax.f32 %v1669, %v1671
    %v1724 = vmax.f32 %v1672, %v1674
    %v1725 = vmax.f32 %v1673, %v1675
    %v1726 = vmax.f32 %v1676, %v1678
    %v1727 = vmax.f32 %v1677, %v1679
    %v1728 = vmax.f32 %v1680, %v1682
    %v1729 = vmax.f32 %v1681, %v1683
    %v1730 = vmax.f32 %v1684, %v1686
    %v1731 = vmax.f32 %v1685, %v1687
    %v1732 = vmax.f32 %v1688, %v1690
    %v1733 = vmax.f32 %v1689, %v1691
    %v1734 = vmax.f32 %v1692, %v1694
    %v1735 = vmax.f32 %v1693, %v1695
    %v1736 = vmax.f32 %v1696, %v1698
    %v1737 = vmax.f32 %v1697, %v1699
    %v1738 = vmax.f32 %v1700, %v1702
    %v1739 = vmax.f32 %v1701, %v1703
    %v1740 = vmax.f32 %v1704, %v1706
    %v1741 = vmax.f32 %v1705, %v1707
    %v1742 = vmax.f32 %v1708, %v1710
    %v1743 = vmax.f32 %v1709, %v1711
    %v1744 = vld [vmem:[%s9] sm:$0x3]
    %v1745 = vld [vmem:[%s10] sm:$0x3]
    %1746 = vmatpush.msra.mxu0 %v1743
    %1747 = vmatpush.msra.mxu0 %v1741
    %1748 = vmatpush.msra.mxu0 %v1739
    %1749 = vmatpush.msra.mxu0 %v1737
    %1750 = vmatpush.msra.mxu0 %v1735
    %1751 = vmatpush.msra.mxu0 %v1733
    %1752 = vmatpush.msra.mxu0 %v1731
    %1753 = vmatpush.msra.mxu0 %v1729
    %1754 = vmatpush.msra.mxu0 %v1727
    %1755 = vmatpush.msra.mxu0 %v1725
    %1756 = vmatpush.msra.mxu0 %v1723
    %1757 = vmatpush.msra.mxu0 %v1721
    %1758 = vmatpush.msra.mxu0 %v1719
    %1759 = vmatpush.msra.mxu0 %v1717
    %1760 = vmatpush.msra.mxu0 %v1715
    %1761 = vmatpush.msra.mxu0 %v1713
    %1762 = vmatmul.f32.gmra.mxu0 %v1745
    %v1763 = vpop.f32.mrf.mxu0
    %v1764 = vadd.f32 0.0, %v1763
    %1765 = vdwg.mxu0
    %1766 = vmatpush.msra.mxu0 %v1742
    %1767 = vmatpush.msra.mxu0 %v1740
    %1768 = vmatpush.msra.mxu0 %v1738
    %1769 = vmatpush.msra.mxu0 %v1736
    %1770 = vmatpush.msra.mxu0 %v1734
    %1771 = vmatpush.msra.mxu0 %v1732
    %1772 = vmatpush.msra.mxu0 %v1730
    %1773 = vmatpush.msra.mxu0 %v1728
    %1774 = vmatpush.msra.mxu0 %v1726
    %1775 = vmatpush.msra.mxu0 %v1724
    %1776 = vmatpush.msra.mxu0 %v1722
    %1777 = vmatpush.msra.mxu0 %v1720
    %1778 = vmatpush.msra.mxu0 %v1718
    %1779 = vmatpush.msra.mxu0 %v1716
    %1780 = vmatpush.msra.mxu0 %v1714
    %1781 = vmatpush.msra.mxu0 %v1712
    %1782 = vmatmul.f32.gmra.mxu0 %v1744
    %v1783 = vpop.f32.mrf.mxu0
    %v1784 = vadd.f32 %v1764, %v1783
    %1785 = vdwg.mxu0
    %v1786 = vld [vmem:[%s11] sm:$0x3]
    %1788 = vset.pattern.permute.xlu0 0
    %1789 = vperm.xlu0 %1788, %v1786
    %v1790 = vpop.permute.xlu0 %1789
    %v1792 = vadd.f32 %v1784, %v1790
    %v1793 = vxor.u32 %v1792, 2147483648
    %v1794 = vmul.f32 %v1793, 1.442695
    %v1795 = vpow.pop %v1794
    %v1796 = vadd.f32 %v1795, 1.0
    %v1797 = vrcp.pop %v1796
    %v1798 = vmul.f32 %v1796, %v1797
    %v1799 = vsub.f32 1.0, %v1798
    %v1800 = vmul.f32 %v1797, %v1799
    %v1801 = vadd.f32 %v1797, %v1800
    %vm1802 = vweird.f32 %v1796
    %vm1803 = vweird.f32 %v1797
    %vm1804 = vmor %vm1802, %vm1803
    %v1805 = vsel %vm1804, %v1797, %v1801
    %v1806 = vand.u32 2147483647, %v1796
    %vm1807 = vcmp.eq.f32.partialorder %v1806, 8.507059e+37
    %v1808 = vand.u32 %v1796, 2147483648
    %v1809 = vor.u32 1.1754944e-38, %v1808
    %v1810 = vsel %vm1807, %v1809, %v1805
    %v1811 = vmul.f32 1.0, %v1810
    %1812 = vst [vmem:[#allocation2] sm:$0x3] %v1811
    // Predicated region
    $region50: #{tpu_custom_call.1} parent=1 // pred_check
      _
    $region51: #{tpu_custom_call.1} parent=1 // pred_check_branch
      %1814 = sbr.rel (0) target = $region53
    $region52: #{tpu_custom_call.1} parent=1 // pred_region
      %1816 = vsyncadd [#allocation3], 0
      %s1818 = sshll.u32 [#allocation2], 4
      %s1819 = int_to_ptr.vmem [resolvable:$true] %s1818
      %s1820 = sshll.u32 %s12, 4
      %s1821 = int_to_ptr.hbm [resolvable:$true] %s1820
      %1823 = dma.vmem_to_hbm [thread:$0]  %s1819, 32, %s1821, [#allocation3]
    $region53: #{tpu_custom_call.1} parent=1 // pred_fallthru
      _
    // Predicated region
    $region54: #{tpu_custom_call.1} parent=1 // pred_check
      _
    $region55: #{tpu_custom_call.1} parent=1 // pred_check_branch
      %1825 = sbr.rel (0) target = $region57
    $region56: #{tpu_custom_call.1} parent=1 // pred_region
      %1827 = dma.done [#allocation3], 32
    $region57: #{tpu_custom_call.1} parent=1 // pred_fallthru
      _
    %1828 = vsyncpa [#allocation3], 1

</llo_original>
